<compile_context>
chip_gen: v7x
topology: tpu7x:2x2x1
jax: 0.10.0
libtpu: 0.0.40
codegen_flags: <defaults>
</compile_context>

<pallas_src>
import numpy as np
import jax
import jax.numpy as jnp
from jax.experimental import pallas as pl
from jax.experimental.pallas import tpu as pltpu


_TRANSFORM_NAMES = ['ROT', 'HFLIP', 'VFLIP', 'CJITT', 'GAUSS', 'DROP', 'ERASE',
                    'POSTERIZE', 'SHARPNESS', 'CONTRAST', 'EQUALIZE', 'SOLARIZE',
                    'ELASTIC']

_HIGHEST = jax.lax.Precision.HIGHEST


# ----------------------------------------------------------------------------
# Host-side operator matrices (deterministic "parameters" of the module).
# ----------------------------------------------------------------------------
def _reverse_matrix(n):
    # Anti-diagonal permutation: X @ R flips the last axis, R @ X flips rows.
    return np.eye(n, dtype=np.float32)[::-1].copy()


def _band_matrix(n):
    # 3-wide band of ones (zero outside) -> box part of the 3x3 sharpness kernel.
    m = np.zeros((n, n), dtype=np.float32)
    for i in range(n):
        for j in range(max(0, i - 1), min(n, i + 2)):
            m[i, j] = 1.0
    return m


def _gaussian_matrix(n, ksize=5, sigma=0.55):
    # Right-multiply form: y[v] = sum_w x[w] * M[w, v], reflect padding,
    # torchvision-style 1-D kernel.
    # TODO(synk): torchvision draws sigma ~ U(0.1, 1) at transform build time;
    # a fixed sigma=0.55 (midpoint) is used here for determinism.
    half = (ksize - 1) / 2.0
    xs = np.arange(ksize, dtype=np.float64) - half
    pdf = np.exp(-0.5 * (xs / sigma) ** 2)
    w = (pdf / pdf.sum()).astype(np.float32)
    m = np.zeros((n, n), dtype=np.float32)
    for v in range(n):
        for t in range(ksize):
            src = v + t - ksize // 2
            if src < 0:
                src = -src
            if src > n - 1:
                src = 2 * (n - 1) - src
            m[src, v] += w[t]
    return m


# ----------------------------------------------------------------------------
# Pallas kernel: one load, fused augmentation chain, one store.
# ----------------------------------------------------------------------------
def _augment_kernel(flags_ref, x_ref, u_ref, klin_ref, kblur_ref, inter_ref, o_ref):
    # x_ref / u_ref / o_ref : (BB, HW) f32, lane-dense (HW multiple of 128)
    # klin_ref / kblur_ref  : (HW, HW) f32 operator matrices
    # inter_ref             : (1, HW) f32 static interior mask
    # flags_ref             : (13,) f32 in SMEM, exact {0.0, 1.0} gates
    y = x_ref[...]

    # [0] RandomRotation(0..360, NEAREST)
    # TODO(synk): arbitrary-angle nearest rotation needs a 2-D gather; not implemented.
    # [3] ColorJitter
    # TODO(synk): hue/saturation jitter needs 3-channel RGB<->HSV math; not implemented.

    # [1]+[2]+[4] HFLIP / VFLIP / GaussianBlur(5): a single composed linear
    # operator built in the wrapper (identity when all three flags are off).
    # HIGHEST precision keeps pure-permutation (flip-only) cases bit-exact.
    y = jnp.dot(y, klin_ref[...], preferred_element_type=jnp.float32,
                precision=_HIGHEST)

    g_drop = flags_ref[5]
    g_erase = flags_ref[6]
    g_post = flags_ref[7]
    g_sharp = flags_ref[8]
    g_ac = flags_ref[9]
    g_sol = flags_ref[11]

    # [5] Dropout(p=0.02), train-mode scaling (uniforms supplied lane-dense).
    keep = jnp.where(u_ref[...] >= 0.02, 1.0, 0.0)
    y = g_drop * (y * keep * (1.0 / 0.98)) + (1.0 - g_drop) * y

    # [6] Eraser: zeros_like
    y = (1.0 - g_erase) * y

    # [7] RandomPosterize(bits=2)
    # TODO(synk): torchvision posterize is uint8-only; float approximation
    # (keep top 2 bits of x*255).
    q = jnp.floor(jnp.floor(jnp.clip(y, 0.0, 1.0) * 255.0) * (1.0 / 64.0)) * 64.0
    q = q * (1.0 / 255.0)
    y = g_post * q + (1.0 - g_post) * y

    # [8] RandomAdjustSharpness(factor=2): blend with the 3x3
    # [[1,1,1],[1,5,1],[1,1,1]]/13 blur; border pixels keep the original value
    # (torchvision semantics).  The 3x3 operator + 4*I is prebuilt as kblur;
    # the interior mask is a host-built constant.
    blur = jnp.dot(y, kblur_ref[...], preferred_element_type=jnp.float32,
                   precision=_HIGHEST)
    blur = jnp.clip(blur, 0.0, 1.0)
    inter = inter_ref[...]                       # (1, HW) broadcast over rows
    blur = inter * blur + (1.0 - inter) * y
    sharp = jnp.clip(2.0 * y - blur, 0.0, 1.0)
    y = g_sharp * sharp + (1.0 - g_sharp) * y

    # [9] RandomAutocontrast: per (image, channel) rescale to [0, 1]
    # (each row of the (B, HW) layout is one image-channel -> lane reduce).
    mn = jnp.min(y, axis=1, keepdims=True)
    mx = jnp.max(y, axis=1, keepdims=True)
    flat = jnp.where(mx - mn <= 0.0, 1.0, 0.0)   # (BB, 1)
    scaled = jnp.clip((y - mn) / (mx - mn + flat), 0.0, 1.0)
    ac = flat * jnp.clip(y, 0.0, 1.0) + (1.0 - flat) * scaled
    y = g_ac * ac + (1.0 - g_ac) * y

    # [10] RandomEqualize
    # TODO(synk): histogram equalization is uint8-only and needs per-bin
    # histograms; not implemented.

    # [11] RandomSolarize(threshold=0.8) on float images (bound = 1.0).
    sol = jnp.where(y >= 0.8, 1.0 - y, y)
    y = g_sol * sol + (1.0 - g_sol) * y

    # [12] ElasticTransform(250, sigma=5)
    # TODO(synk): elastic transform needs a displacement-field grid_sample
    # gather; not implemented.

    o_ref[...] = y


# ----------------------------------------------------------------------------
# Wrapper: operator composition, random draws, pallas_call.
# ----------------------------------------------------------------------------
def _augment_impl(cat, flags, drop_u):
    N, C, H, W = cat.shape
    B, HW = N * C, H * W

    # Static operator factors (trace-time numpy constants).
    GH = _gaussian_matrix(H)                 # right-multiply form along H
    GW = _gaussian_matrix(W)                 # right-multiply form along W
    RH = _reverse_matrix(H)
    RW = _reverse_matrix(W)
    BH = _band_matrix(H)
    BW = _band_matrix(W)
    I_H = np.eye(H, dtype=np.float32)
    I_W = np.eye(W, dtype=np.float32)

    f_hflip, f_vflip, f_gauss = flags[1], flags[2], flags[4]

    # Pipeline order: hflip -> vflip -> gaussian blur, i.e.
    #   Y = (GhL^g @ Rh^v) @ X @ (Rw^h @ GwR^g)  =  A @ X @ Bop
    # GhL (left-multiply along H) is the transpose of the right-multiply form.
    hop_blur = jnp.where(f_gauss > 0, jnp.asarray(GH.T), jnp.asarray(I_H))
    hop_flip = jnp.where(f_vflip > 0, jnp.asarray(RH), jnp.asarray(I_H))
    wop_flip = jnp.where(f_hflip > 0, jnp.asarray(RW), jnp.asarray(I_W))
    wop_blur = jnp.where(f_gauss > 0, jnp.asarray(GW), jnp.asarray(I_W))
    A = jnp.matmul(hop_blur, hop_flip, precision=_HIGHEST)
    Bop = jnp.matmul(wop_flip, wop_blur, precision=_HIGHEST)
    # Flattened (row-major) form:  y_flat = x_flat @ kron(A^T, Bop)
    K_lin = jnp.kron(A.T, Bop)                                    # (HW, HW)

    # 3x3 sharpness blur operator: (sum over 3x3 neighborhood + 4*center)/13.
    K_blur = jnp.asarray(
        (np.kron(BH, BW) + 4.0 * np.eye(HW, dtype=np.float32)) / 13.0)

    interior = np.zeros((H, W), dtype=np.float32)
    interior[1:H - 1, 1:W - 1] = 1.0
    interior = jnp.asarray(interior.reshape(1, HW))

    # Lane-dense slab: (B, HW) with HW a multiple of 128.
    x2 = cat.reshape(B, HW).astype(jnp.float32)

    BB = 8 if B % 8 == 0 else B                 # sublane-aligned row block
    grid = (pl.cdiv(B, BB),)

    out = pl.pallas_call(
        _augment_kernel,
        out_shape=jax.ShapeDtypeStruct((B, HW), jnp.float32),
        grid=grid,
        in_specs=[
            pl.BlockSpec(memory_space=pltpu.MemorySpace.SMEM),    # flags
            pl.BlockSpec((BB, HW), lambda i: (i, 0)),             # image slab
            pl.BlockSpec((BB, HW), lambda i: (i, 0)),             # dropout u
            pl.BlockSpec((HW, HW), lambda i: (0, 0)),             # K_lin
            pl.BlockSpec((HW, HW), lambda i: (0, 0)),             # K_blur
            pl.BlockSpec((1, HW), lambda i: (0, 0)),              # interior mask
        ],
        out_specs=pl.BlockSpec((BB, HW), lambda i: (i, 0)),
        input_output_aliases={1: 0},           # image slab aliased to output
        compiler_params=pltpu.CompilerParams(
            dimension_semantics=("parallel",)),
        # NOTE: at realistic image sizes, shrink BB / raise vmem_limit_bytes so
        # the (HW, HW) operators + double-buffered slabs fit v7x's 64 MiB VMEM.
    )(flags, x2, drop_u, K_lin, K_blur, interior)

    return out.reshape(N, C, H, W)


@jax.jit
def _augment_jit(key, cat, probs):
    kf, kd = jax.random.split(key)
    # One vectorized Bernoulli draw for all 13 transform flags.
    flags = (jax.random.uniform(kf, probs.shape) < probs).astype(jnp.float32)
    N, C, H, W = cat.shape
    drop_u = jax.random.uniform(kd, (N * C, H * W), dtype=jnp.float32)
    return _augment_impl(cat, flags, drop_u)


class AugmentData:
    """JAX/Pallas port of the PyTorch AugmentData module (forward semantics)."""

    def __init__(self, cfg_augment, is_training):
        self.cfg = cfg_augment
        self.is_training = is_training
        self._probs = jnp.asarray([float(cfg_augment[n]) for n in _TRANSFORM_NAMES],
                                  dtype=jnp.float32)

    def __call__(self, key, *args):
        if not self.is_training:
            return args if len(args) > 1 else args[0]
        # cat([x.unsqueeze(0) for x in args], dim=0) -> (N, C, H, W)
        cat = jnp.stack(args, axis=0)
        out = _augment_jit(key, cat, self._probs)
        outputs = tuple(out[i] for i in range(len(args)))
        return outputs if len(outputs) > 1 else outputs[0]


if __name__ == "__main__":
    key = jax.random.PRNGKey(0)
    k1, k2, kflags = jax.random.split(key, 3)

    # Two input tensors [channel, height, width], values in [0, 1] (image-like).
    x1 = jax.random.uniform(k1, (4, 16, 16), dtype=jnp.float32)
    x2 = jax.random.uniform(k2, (4, 16, 16), dtype=jnp.float32)

    cfg = {n: 1.0 for n in _TRANSFORM_NAMES}  # always apply -> exercise every branch
    aug = AugmentData(cfg, is_training=True)

    y1, y2 = aug(kflags, x1, x2)
    jax.block_until_ready(y1)
    jax.block_until_ready(y2)
    assert y1.shape == (4, 16, 16) and y2.shape == (4, 16, 16)
    print("KERNEL_OK")
</pallas_src>

<mosaic_0001>
module attributes {stable_mosaic.version = 11 : i64} {
  func.func @_augment_kernel(%arg0: i32, %arg1: memref<13xf32, #tpu.memory_space<smem>>, %arg2: memref<8x256xf32, #tpu.memory_space<vmem>>, %arg3: memref<8x256xf32, #tpu.memory_space<vmem>>, %arg4: memref<256x256xf32, #tpu.memory_space<vmem>>, %arg5: memref<256x256xf32, #tpu.memory_space<vmem>>, %arg6: memref<1x256xf32, #tpu.memory_space<vmem>>, %arg7: memref<8x256xf32, #tpu.memory_space<vmem>>) attributes {dimension_semantics = [#tpu.dimension_semantics<parallel>], iteration_bounds = array<i64: 1>, scalar_prefetch = 0 : i64, scratch_operands = 0 : i64, tpu.core_type = #tpu.core_type<tc>, window_params = [{transform_indices = @transform_0, window_bounds = array<i64: 13>}, {transform_indices = @transform_1, window_bounds = array<i64: 8, 256>}, {transform_indices = @transform_2, window_bounds = array<i64: 8, 256>}, {pipeline_mode = #tpu.pipeline_mode<synchronous>, transform_indices = @transform_3, window_bounds = array<i64: 256, 256>}, {pipeline_mode = #tpu.pipeline_mode<synchronous>, transform_indices = @transform_4, window_bounds = array<i64: 256, 256>}, {pipeline_mode = #tpu.pipeline_mode<synchronous>, transform_indices = @transform_5, window_bounds = array<i64: 1, 256>}, {transform_indices = @transform_6, window_bounds = array<i64: 8, 256>}]} {
    %c0 = arith.constant 0 : index
    %c0_0 = arith.constant 0 : index
    %0 = vector.load %arg2[%c0, %c0_0] : memref<8x256xf32, #tpu.memory_space<vmem>>, vector<8x256xf32>
    %c0_1 = arith.constant 0 : index
    %c0_2 = arith.constant 0 : index
    %1 = vector.load %arg4[%c0_1, %c0_2] : memref<256x256xf32, #tpu.memory_space<vmem>>, vector<256x256xf32>
    %cst = arith.constant dense<0.000000e+00> : vector<8x256xf32>
    %2 = tpu.matmul %0, %1, %cst {dimension_numbers = #tpu.dot_dimension_numbers<[1], [0], [0], [1], [0, 0, 1, 1], [], []>, precision = #tpu.contract_precision<fp32>} : vector<8x256xf32>, vector<256x256xf32>, vector<8x256xf32> -> vector<8x256xf32>
    %c5 = arith.constant 5 : index
    %3 = memref.load %arg1[%c5] : memref<13xf32, #tpu.memory_space<smem>>
    %c6 = arith.constant 6 : index
    %4 = memref.load %arg1[%c6] : memref<13xf32, #tpu.memory_space<smem>>
    %c7 = arith.constant 7 : index
    %5 = memref.load %arg1[%c7] : memref<13xf32, #tpu.memory_space<smem>>
    %c8 = arith.constant 8 : index
    %6 = memref.load %arg1[%c8] : memref<13xf32, #tpu.memory_space<smem>>
    %c9 = arith.constant 9 : index
    %7 = memref.load %arg1[%c9] : memref<13xf32, #tpu.memory_space<smem>>
    %c11 = arith.constant 11 : index
    %8 = memref.load %arg1[%c11] : memref<13xf32, #tpu.memory_space<smem>>
    %c0_3 = arith.constant 0 : index
    %c0_4 = arith.constant 0 : index
    %9 = vector.load %arg3[%c0_3, %c0_4] : memref<8x256xf32, #tpu.memory_space<vmem>>, vector<8x256xf32>
    %cst_5 = arith.constant 2.000000e-02 : f32
    %10 = vector.broadcast %cst_5 : f32 to vector<8x256xf32>
    %11 = arith.cmpf oge, %9, %10 : vector<8x256xf32>
    %cst_6 = arith.constant 1.000000e+00 : f32
    %cst_7 = arith.constant 0.000000e+00 : f32
    %12 = vector.broadcast %cst_6 : f32 to vector<8x256xf32>
    %13 = vector.broadcast %cst_7 : f32 to vector<8x256xf32>
    %14 = arith.select %11, %12, %13 : vector<8x256xi1>, vector<8x256xf32>
    %15 = arith.mulf %2, %14 : vector<8x256xf32>
    %cst_8 = arith.constant 1.02040815 : f32
    %16 = vector.broadcast %cst_8 : f32 to vector<8x256xf32>
    %17 = arith.mulf %15, %16 : vector<8x256xf32>
    %18 = vector.broadcast %3 : f32 to vector<8x256xf32>
    %19 = arith.mulf %18, %17 : vector<8x256xf32>
    %cst_9 = arith.constant 1.000000e+00 : f32
    %20 = arith.subf %cst_9, %3 : f32
    %21 = vector.broadcast %20 : f32 to vector<8x256xf32>
    %22 = arith.mulf %21, %2 : vector<8x256xf32>
    %23 = arith.addf %19, %22 : vector<8x256xf32>
    %cst_10 = arith.constant 1.000000e+00 : f32
    %24 = arith.subf %cst_10, %4 : f32
    %25 = vector.broadcast %24 : f32 to vector<8x256xf32>
    %26 = arith.mulf %25, %23 : vector<8x256xf32>
    %cst_11 = arith.constant 0.000000e+00 : f32
    %cst_12 = arith.constant 1.000000e+00 : f32
    %27 = vector.broadcast %cst_11 : f32 to vector<8x256xf32>
    %28 = arith.maximumf %27, %26 : vector<8x256xf32>
    %29 = vector.broadcast %cst_12 : f32 to vector<8x256xf32>
    %30 = arith.minimumf %29, %28 : vector<8x256xf32>
    %cst_13 = arith.constant 2.550000e+02 : f32
    %31 = vector.broadcast %cst_13 : f32 to vector<8x256xf32>
    %32 = arith.mulf %30, %31 : vector<8x256xf32>
    %33 = math.floor %32 : vector<8x256xf32>
    %cst_14 = arith.constant 1.562500e-02 : f32
    %34 = vector.broadcast %cst_14 : f32 to vector<8x256xf32>
    %35 = arith.mulf %33, %34 : vector<8x256xf32>
    %36 = math.floor %35 : vector<8x256xf32>
    %cst_15 = arith.constant 6.400000e+01 : f32
    %37 = vector.broadcast %cst_15 : f32 to vector<8x256xf32>
    %38 = arith.mulf %36, %37 : vector<8x256xf32>
    %cst_16 = arith.constant 0.00392156886 : f32
    %39 = vector.broadcast %cst_16 : f32 to vector<8x256xf32>
    %40 = arith.mulf %38, %39 : vector<8x256xf32>
    %41 = vector.broadcast %5 : f32 to vector<8x256xf32>
    %42 = arith.mulf %41, %40 : vector<8x256xf32>
    %cst_17 = arith.constant 1.000000e+00 : f32
    %43 = arith.subf %cst_17, %5 : f32
    %44 = vector.broadcast %43 : f32 to vector<8x256xf32>
    %45 = arith.mulf %44, %26 : vector<8x256xf32>
    %46 = arith.addf %42, %45 : vector<8x256xf32>
    %c0_18 = arith.constant 0 : index
    %c0_19 = arith.constant 0 : index
    %47 = vector.load %arg5[%c0_18, %c0_19] : memref<256x256xf32, #tpu.memory_space<vmem>>, vector<256x256xf32>
    %cst_20 = arith.constant dense<0.000000e+00> : vector<8x256xf32>
    %48 = tpu.matmul %46, %47, %cst_20 {dimension_numbers = #tpu.dot_dimension_numbers<[1], [0], [0], [1], [0, 0, 1, 1], [], []>, precision = #tpu.contract_precision<fp32>} : vector<8x256xf32>, vector<256x256xf32>, vector<8x256xf32> -> vector<8x256xf32>
    %cst_21 = arith.constant 0.000000e+00 : f32
    %cst_22 = arith.constant 1.000000e+00 : f32
    %49 = vector.broadcast %cst_21 : f32 to vector<8x256xf32>
    %50 = arith.maximumf %49, %48 : vector<8x256xf32>
    %51 = vector.broadcast %cst_22 : f32 to vector<8x256xf32>
    %52 = arith.minimumf %51, %50 : vector<8x256xf32>
    %c0_23 = arith.constant 0 : index
    %c0_24 = arith.constant 0 : index
    %53 = vector.load %arg6[%c0_23, %c0_24] : memref<1x256xf32, #tpu.memory_space<vmem>>, vector<1x256xf32>
    %54 = vector.broadcast %53 : vector<1x256xf32> to vector<8x256xf32>
    %55 = arith.mulf %54, %52 : vector<8x256xf32>
    %cst_25 = arith.constant 1.000000e+00 : f32
    %56 = vector.broadcast %cst_25 : f32 to vector<1x256xf32>
    %57 = arith.subf %56, %53 : vector<1x256xf32>
    %58 = vector.broadcast %57 : vector<1x256xf32> to vector<8x256xf32>
    %59 = arith.mulf %58, %46 : vector<8x256xf32>
    %60 = arith.addf %55, %59 : vector<8x256xf32>
    %cst_26 = arith.constant 2.000000e+00 : f32
    %61 = vector.broadcast %cst_26 : f32 to vector<8x256xf32>
    %62 = arith.mulf %61, %46 : vector<8x256xf32>
    %63 = arith.subf %62, %60 : vector<8x256xf32>
    %cst_27 = arith.constant 0.000000e+00 : f32
    %cst_28 = arith.constant 1.000000e+00 : f32
    %64 = vector.broadcast %cst_27 : f32 to vector<8x256xf32>
    %65 = arith.maximumf %64, %63 : vector<8x256xf32>
    %66 = vector.broadcast %cst_28 : f32 to vector<8x256xf32>
    %67 = arith.minimumf %66, %65 : vector<8x256xf32>
    %68 = vector.broadcast %6 : f32 to vector<8x256xf32>
    %69 = arith.mulf %68, %67 : vector<8x256xf32>
    %cst_29 = arith.constant 1.000000e+00 : f32
    %70 = arith.subf %cst_29, %6 : f32
    %71 = vector.broadcast %70 : f32 to vector<8x256xf32>
    %72 = arith.mulf %71, %46 : vector<8x256xf32>
    %73 = arith.addf %69, %72 : vector<8x256xf32>
    %cst_30 = arith.constant dense<0x7F800000> : vector<8xf32>
    %74 = vector.multi_reduction <minimumf>, %73, %cst_30 [1] : vector<8x256xf32> to vector<8xf32>
    %75 = vector.shape_cast %74 : vector<8xf32> to vector<8x1xf32>
    %cst_31 = arith.constant dense<0xFF800000> : vector<8xf32>
    %76 = vector.multi_reduction <maximumf>, %73, %cst_31 [1] : vector<8x256xf32> to vector<8xf32>
    %77 = vector.shape_cast %76 : vector<8xf32> to vector<8x1xf32>
    %78 = arith.subf %77, %75 : vector<8x1xf32>
    %cst_32 = arith.constant 0.000000e+00 : f32
    %79 = vector.broadcast %cst_32 : f32 to vector<8x1xf32>
    %80 = arith.cmpf ole, %78, %79 : vector<8x1xf32>
    %cst_33 = arith.constant 1.000000e+00 : f32
    %cst_34 = arith.constant 0.000000e+00 : f32
    %81 = vector.broadcast %cst_33 : f32 to vector<8x1xf32>
    %82 = vector.broadcast %cst_34 : f32 to vector<8x1xf32>
    %83 = arith.select %80, %81, %82 : vector<8x1xi1>, vector<8x1xf32>
    %84 = vector.broadcast %75 : vector<8x1xf32> to vector<8x256xf32>
    %85 = arith.subf %73, %84 : vector<8x256xf32>
    %86 = arith.subf %77, %75 : vector<8x1xf32>
    %87 = arith.addf %86, %83 : vector<8x1xf32>
    %88 = vector.broadcast %87 : vector<8x1xf32> to vector<8x256xf32>
    %89 = arith.divf %85, %88 : vector<8x256xf32>
    %cst_35 = arith.constant 0.000000e+00 : f32
    %cst_36 = arith.constant 1.000000e+00 : f32
    %90 = vector.broadcast %cst_35 : f32 to vector<8x256xf32>
    %91 = arith.maximumf %90, %89 : vector<8x256xf32>
    %92 = vector.broadcast %cst_36 : f32 to vector<8x256xf32>
    %93 = arith.minimumf %92, %91 : vector<8x256xf32>
    %cst_37 = arith.constant 0.000000e+00 : f32
    %cst_38 = arith.constant 1.000000e+00 : f32
    %94 = vector.broadcast %cst_37 : f32 to vector<8x256xf32>
    %95 = arith.maximumf %94, %73 : vector<8x256xf32>
    %96 = vector.broadcast %cst_38 : f32 to vector<8x256xf32>
    %97 = arith.minimumf %96, %95 : vector<8x256xf32>
    %98 = vector.broadcast %83 : vector<8x1xf32> to vector<8x256xf32>
    %99 = arith.mulf %98, %97 : vector<8x256xf32>
    %cst_39 = arith.constant 1.000000e+00 : f32
    %100 = vector.broadcast %cst_39 : f32 to vector<8x1xf32>
    %101 = arith.subf %100, %83 : vector<8x1xf32>
    %102 = vector.broadcast %101 : vector<8x1xf32> to vector<8x256xf32>
    %103 = arith.mulf %102, %93 : vector<8x256xf32>
    %104 = arith.addf %99, %103 : vector<8x256xf32>
    %105 = vector.broadcast %7 : f32 to vector<8x256xf32>
    %106 = arith.mulf %105, %104 : vector<8x256xf32>
    %cst_40 = arith.constant 1.000000e+00 : f32
    %107 = arith.subf %cst_40, %7 : f32
    %108 = vector.broadcast %107 : f32 to vector<8x256xf32>
    %109 = arith.mulf %108, %73 : vector<8x256xf32>
    %110 = arith.addf %106, %109 : vector<8x256xf32>
    %cst_41 = arith.constant 8.000000e-01 : f32
    %111 = vector.broadcast %cst_41 : f32 to vector<8x256xf32>
    %112 = arith.cmpf oge, %110, %111 : vector<8x256xf32>
    %cst_42 = arith.constant 1.000000e+00 : f32
    %113 = vector.broadcast %cst_42 : f32 to vector<8x256xf32>
    %114 = arith.subf %113, %110 : vector<8x256xf32>
    %115 = arith.select %112, %114, %110 : vector<8x256xi1>, vector<8x256xf32>
    %116 = vector.broadcast %8 : f32 to vector<8x256xf32>
    %117 = arith.mulf %116, %115 : vector<8x256xf32>
    %cst_43 = arith.constant 1.000000e+00 : f32
    %118 = arith.subf %cst_43, %8 : f32
    %119 = vector.broadcast %118 : f32 to vector<8x256xf32>
    %120 = arith.mulf %119, %110 : vector<8x256xf32>
    %121 = arith.addf %117, %120 : vector<8x256xf32>
    %c0_44 = arith.constant 0 : index
    %c0_45 = arith.constant 0 : index
    %122 = vector.load %arg7[%c0_44, %c0_45] : memref<8x256xf32, #tpu.memory_space<vmem>>, vector<8x256xf32>
    tpu.vector_store %arg7[%c0_44, %c0_45], %121 {strides = array<i32>} : memref<8x256xf32, #tpu.memory_space<vmem>>, vector<8x256xf32>,
    return
  }
  func.func @transform_0(%arg0: i32) -> i32 {
    %c0_i32 = arith.constant 0 : i32
    %c0_i32_0 = arith.constant 0 : i32
    return %c0_i32 : i32
  }
  func.func @transform_1(%arg0: i32) -> (i32, i32) {
    %c0_i32 = arith.constant 0 : i32
    %c0_i32_0 = arith.constant 0 : i32
    return %arg0, %c0_i32 : i32, i32
  }
  func.func @transform_2(%arg0: i32) -> (i32, i32) {
    %c0_i32 = arith.constant 0 : i32
    %c0_i32_0 = arith.constant 0 : i32
    return %arg0, %c0_i32 : i32, i32
  }
  func.func @transform_3(%arg0: i32) -> (i32, i32) {
    %c0_i32 = arith.constant 0 : i32
    %c0_i32_0 = arith.constant 0 : i32
    %c0_i32_1 = arith.constant 0 : i32
    return %c0_i32, %c0_i32_0 : i32, i32
  }
  func.func @transform_4(%arg0: i32) -> (i32, i32) {
    %c0_i32 = arith.constant 0 : i32
    %c0_i32_0 = arith.constant 0 : i32
    %c0_i32_1 = arith.constant 0 : i32
    return %c0_i32, %c0_i32_0 : i32, i32
  }
  func.func @transform_5(%arg0: i32) -> (i32, i32) {
    %c0_i32 = arith.constant 0 : i32
    %c0_i32_0 = arith.constant 0 : i32
    %c0_i32_1 = arith.constant 0 : i32
    return %c0_i32, %c0_i32_0 : i32, i32
  }
  func.func @transform_6(%arg0: i32) -> (i32, i32) {
    %c0_i32 = arith.constant 0 : i32
    %c0_i32_0 = arith.constant 0 : i32
    return %arg0, %c0_i32 : i32, i32
  }
}

</mosaic_0001>

<llo_original>
// kernel: _augment_jit.3
$region0: #{_augment_jit.3}
  #allocation0 [shape = 'u32[]', space=smem, size = 0x4, offset = 0x4, fixed_abs, tag = 'smem constant byte address 0x4 - core index']
  #allocation1 [shape = 'u32[144,128]{1,0:T(1,128)}', space=vmem, size = 0x12000, scoped, tag = 'internal scratch']
  %s0 = inlined_call_operand.vmem [shape: f32[13], index: 0, kind: input, shape index: {}]
  %s1 = inlined_call_operand.vmem [shape: f32[8,256], index: 1, kind: input, shape index: {}, may-alias: {1,6}]
  %s2 = inlined_call_operand.vmem [shape: f32[8,256], index: 2, kind: input, shape index: {}]
  %s3 = inlined_call_operand.vmem [shape: f32[256,256], index: 3, kind: input, shape index: {}]
  %s4 = inlined_call_operand.vmem [shape: f32[256,256], index: 4, kind: input, shape index: {}]
  %s5 = inlined_call_operand.vmem [shape: f32[1,256], index: 5, kind: input, shape index: {}]
  %s6 = inlined_call_operand.vmem [shape: f32[8,256], index: 6, kind: output, shape index: {}, may-alias: {1,6}]
  %s7 = sld [smem:[#allocation0]]
  $region38: #{_augment_jit.3} parent=0
    _
  %s9 = ssub.s32 1, %s7
  %s10 = scalar_select 0, %s9, %s7
  $region1: #{_augment_jit.3} parent=0
    #allocation2 [shape = 'u8[512]{0}', space=smem, size = 0x200, scoped, tag = 'input window, operand 0, single buffered']
    #allocation3 [shape = 's32[1]{0}', space=sflag, size = 0x4, scoped, tag = 'scoped memory for _augment_jit.3']
    %11 = vsyncpa [#allocation3], 0
    // Predicated region
    $region2: #{_augment_jit.3} parent=1 // pred_check
      _
    $region3: #{_augment_jit.3} parent=1 // pred_check_branch
      %13 = sbr.rel (0) target = $region5
    $region4: #{_augment_jit.3} parent=1 // pred_region
      %s15 = ssub.s32 16, 16
      %16 = vsyncadd [#allocation3], %s15
      %s18 = sshll.u32 %s0, 4
      %s19 = int_to_ptr.vmem [resolvable:$true] %s18
      %21 = dma.vmem_to_smem %s19, 16, [#allocation2], [#allocation3]
    $region5: #{_augment_jit.3} parent=1 // pred_fallthru
      _
    // Predicated region
    $region6: #{_augment_jit.3} parent=1 // pred_check
      _
    $region7: #{_augment_jit.3} parent=1 // pred_check_branch
      %23 = sbr.rel (0) target = $region9
    $region8: #{_augment_jit.3} parent=1 // pred_region
      _
    $region9: #{_augment_jit.3} parent=1 // pred_fallthru
      _
    // Predicated region
    $region10: #{_augment_jit.3} parent=1 // pred_check
      _
    $region11: #{_augment_jit.3} parent=1 // pred_check_branch
      %25 = sbr.rel (0) target = $region13
    $region12: #{_augment_jit.3} parent=1 // pred_region
      _
    $region13: #{_augment_jit.3} parent=1 // pred_fallthru
      _
    // Predicated region
    $region14: #{_augment_jit.3} parent=1 // pred_check
      _
    $region15: #{_augment_jit.3} parent=1 // pred_check_branch
      %27 = sbr.rel (0) target = $region17
    $region16: #{_augment_jit.3} parent=1 // pred_region
      _
    $region17: #{_augment_jit.3} parent=1 // pred_fallthru
      _
    // Predicated region
    $region18: #{_augment_jit.3} parent=1 // pred_check
      _
    $region19: #{_augment_jit.3} parent=1 // pred_check_branch
      %29 = sbr.rel (0) target = $region21
    $region20: #{_augment_jit.3} parent=1 // pred_region
      _
    $region21: #{_augment_jit.3} parent=1 // pred_fallthru
      _
    // Predicated region
    $region22: #{_augment_jit.3} parent=1 // pred_check
      _
    $region23: #{_augment_jit.3} parent=1 // pred_check_branch
      %31 = sbr.rel (0) target = $region25
    $region24: #{_augment_jit.3} parent=1 // pred_region
      _
    $region25: #{_augment_jit.3} parent=1 // pred_fallthru
      _
    // Predicated region
    $region26: #{_augment_jit.3} parent=1 // pred_check
      _
    $region27: #{_augment_jit.3} parent=1 // pred_check_branch
      %33 = sbr.rel (0) target = $region29
    $region28: #{_augment_jit.3} parent=1 // pred_region
      %34 = dma.done [#allocation3], 16
    $region29: #{_augment_jit.3} parent=1 // pred_fallthru
      _
    %35 = sfence
    %v36 = vld [vmem:[%s1] sm:$0xff]
    %v37 = vld [vmem:[%s1 + $0x8] sm:$0xff]
    %v38 = vld [vmem:[%s3] sm:$0xff]
    %v39 = vld [vmem:[%s3 + $0x8] sm:$0xff]
    %v40 = vld [vmem:[%s3 + $0x10] sm:$0xff]
    %v41 = vld [vmem:[%s3 + $0x18] sm:$0xff]
    %v42 = vld [vmem:[%s3 + $0x20] sm:$0xff]
    %v43 = vld [vmem:[%s3 + $0x28] sm:$0xff]
    %v44 = vld [vmem:[%s3 + $0x30] sm:$0xff]
    %v45 = vld [vmem:[%s3 + $0x38] sm:$0xff]
    %v46 = vld [vmem:[%s3 + $0x40] sm:$0xff]
    %v47 = vld [vmem:[%s3 + $0x48] sm:$0xff]
    %v48 = vld [vmem:[%s3 + $0x50] sm:$0xff]
    %v49 = vld [vmem:[%s3 + $0x58] sm:$0xff]
    %v50 = vld [vmem:[%s3 + $0x60] sm:$0xff]
    %v51 = vld [vmem:[%s3 + $0x68] sm:$0xff]
    %v52 = vld [vmem:[%s3 + $0x70] sm:$0xff]
    %v53 = vld [vmem:[%s3 + $0x78] sm:$0xff]
    %v54 = vld [vmem:[%s3 + $0x80] sm:$0xff]
    %v55 = vld [vmem:[%s3 + $0x88] sm:$0xff]
    %v56 = vld [vmem:[%s3 + $0x90] sm:$0xff]
    %v57 = vld [vmem:[%s3 + $0x98] sm:$0xff]
    %v58 = vld [vmem:[%s3 + $0xa0] sm:$0xff]
    %v59 = vld [vmem:[%s3 + $0xa8] sm:$0xff]
    %v60 = vld [vmem:[%s3 + $0xb0] sm:$0xff]
    %v61 = vld [vmem:[%s3 + $0xb8] sm:$0xff]
    %v62 = vld [vmem:[%s3 + $0xc0] sm:$0xff]
    %v63 = vld [vmem:[%s3 + $0xc8] sm:$0xff]
    %v64 = vld [vmem:[%s3 + $0xd0] sm:$0xff]
    %v65 = vld [vmem:[%s3 + $0xd8] sm:$0xff]
    %v66 = vld [vmem:[%s3 + $0xe0] sm:$0xff]
    %v67 = vld [vmem:[%s3 + $0xe8] sm:$0xff]
    %v68 = vld [vmem:[%s3 + $0xf0] sm:$0xff]
    %v69 = vld [vmem:[%s3 + $0xf8] sm:$0xff]
    %v70 = vld [vmem:[%s3 + $0x100] sm:$0xff]
    %v71 = vld [vmem:[%s3 + $0x108] sm:$0xff]
    %v72 = vld [vmem:[%s3 + $0x110] sm:$0xff]
    %v73 = vld [vmem:[%s3 + $0x118] sm:$0xff]
    %v74 = vld [vmem:[%s3 + $0x120] sm:$0xff]
    %v75 = vld [vmem:[%s3 + $0x128] sm:$0xff]
    %v76 = vld [vmem:[%s3 + $0x130] sm:$0xff]
    %v77 = vld [vmem:[%s3 + $0x138] sm:$0xff]
    %v78 = vld [vmem:[%s3 + $0x140] sm:$0xff]
    %v79 = vld [vmem:[%s3 + $0x148] sm:$0xff]
    %v80 = vld [vmem:[%s3 + $0x150] sm:$0xff]
    %v81 = vld [vmem:[%s3 + $0x158] sm:$0xff]
    %v82 = vld [vmem:[%s3 + $0x160] sm:$0xff]
    %v83 = vld [vmem:[%s3 + $0x168] sm:$0xff]
    %v84 = vld [vmem:[%s3 + $0x170] sm:$0xff]
    %v85 = vld [vmem:[%s3 + $0x178] sm:$0xff]
    %v86 = vld [vmem:[%s3 + $0x180] sm:$0xff]
    %v87 = vld [vmem:[%s3 + $0x188] sm:$0xff]
    %v88 = vld [vmem:[%s3 + $0x190] sm:$0xff]
    %v89 = vld [vmem:[%s3 + $0x198] sm:$0xff]
    %v90 = vld [vmem:[%s3 + $0x1a0] sm:$0xff]
    %v91 = vld [vmem:[%s3 + $0x1a8] sm:$0xff]
    %v92 = vld [vmem:[%s3 + $0x1b0] sm:$0xff]
    %v93 = vld [vmem:[%s3 + $0x1b8] sm:$0xff]
    %v94 = vld [vmem:[%s3 + $0x1c0] sm:$0xff]
    %v95 = vld [vmem:[%s3 + $0x1c8] sm:$0xff]
    %v96 = vld [vmem:[%s3 + $0x1d0] sm:$0xff]
    %v97 = vld [vmem:[%s3 + $0x1d8] sm:$0xff]
    %v98 = vld [vmem:[%s3 + $0x1e0] sm:$0xff]
    %v99 = vld [vmem:[%s3 + $0x1e8] sm:$0xff]
    %v100 = vld [vmem:[%s3 + $0x1f0] sm:$0xff]
    %v101 = vld [vmem:[%s3 + $0x1f8] sm:$0xff]
    %v102 = vand.u32 %v39, 4294901760
    %103 = vmatprep.subr.mxu0 %v102
    %v104 = vand.u32 %v38, 4294901760
    %105 = vmatpush1.msra.mxu0 %v104
    %v106 = vand.u32 %v41, 4294901760
    %107 = vmatprep.subr.mxu0 %v106
    %v108 = vand.u32 %v40, 4294901760
    %109 = vmatpush1.msra.mxu0 %v108
    %v110 = vand.u32 %v43, 4294901760
    %111 = vmatprep.subr.mxu0 %v110
    %v112 = vand.u32 %v42, 4294901760
    %113 = vmatpush1.msra.mxu0 %v112
    %v114 = vand.u32 %v45, 4294901760
    %115 = vmatprep.subr.mxu0 %v114
    %v116 = vand.u32 %v44, 4294901760
    %117 = vmatpush1.msra.mxu0 %v116
    %v118 = vand.u32 %v47, 4294901760
    %119 = vmatprep.subr.mxu0 %v118
    %v120 = vand.u32 %v46, 4294901760
    %121 = vmatpush1.msra.mxu0 %v120
    %v122 = vand.u32 %v49, 4294901760
    %123 = vmatprep.subr.mxu0 %v122
    %v124 = vand.u32 %v48, 4294901760
    %125 = vmatpush1.msra.mxu0 %v124
    %v126 = vand.u32 %v51, 4294901760
    %127 = vmatprep.subr.mxu0 %v126
    %v128 = vand.u32 %v50, 4294901760
    %129 = vmatpush1.msra.mxu0 %v128
    %v130 = vand.u32 %v53, 4294901760
    %131 = vmatprep.subr.mxu0 %v130
    %v132 = vand.u32 %v52, 4294901760
    %133 = vmatpush1.msra.mxu0 %v132
    %v134 = vand.u32 %v55, 4294901760
    %135 = vmatprep.subr.mxu0 %v134
    %v136 = vand.u32 %v54, 4294901760
    %137 = vmatpush1.msra.mxu0 %v136
    %v138 = vand.u32 %v57, 4294901760
    %139 = vmatprep.subr.mxu0 %v138
    %v140 = vand.u32 %v56, 4294901760
    %141 = vmatpush1.msra.mxu0 %v140
    %v142 = vand.u32 %v59, 4294901760
    %143 = vmatprep.subr.mxu0 %v142
    %v144 = vand.u32 %v58, 4294901760
    %145 = vmatpush1.msra.mxu0 %v144
    %v146 = vand.u32 %v61, 4294901760
    %147 = vmatprep.subr.mxu0 %v146
    %v148 = vand.u32 %v60, 4294901760
    %149 = vmatpush1.msra.mxu0 %v148
    %v150 = vand.u32 %v63, 4294901760
    %151 = vmatprep.subr.mxu0 %v150
    %v152 = vand.u32 %v62, 4294901760
    %153 = vmatpush1.msra.mxu0 %v152
    %v154 = vand.u32 %v65, 4294901760
    %155 = vmatprep.subr.mxu0 %v154
    %v156 = vand.u32 %v64, 4294901760
    %157 = vmatpush1.msra.mxu0 %v156
    %v158 = vand.u32 %v67, 4294901760
    %159 = vmatprep.subr.mxu0 %v158
    %v160 = vand.u32 %v66, 4294901760
    %161 = vmatpush1.msra.mxu0 %v160
    %v162 = vand.u32 %v69, 4294901760
    %163 = vmatprep.subr.mxu0 %v162
    %v164 = vand.u32 %v68, 4294901760
    %165 = vmatpush1.msra.mxu0 %v164
    %v166 = vand.u32 %v71, 4294901760
    %167 = vmatprep.subr.mxu0 %v166
    %v168 = vand.u32 %v70, 4294901760
    %169 = vmatpush1.msra.mxu0 %v168
    %v170 = vand.u32 %v73, 4294901760
    %171 = vmatprep.subr.mxu0 %v170
    %v172 = vand.u32 %v72, 4294901760
    %173 = vmatpush1.msra.mxu0 %v172
    %v174 = vand.u32 %v75, 4294901760
    %175 = vmatprep.subr.mxu0 %v174
    %v176 = vand.u32 %v74, 4294901760
    %177 = vmatpush1.msra.mxu0 %v176
    %v178 = vand.u32 %v77, 4294901760
    %179 = vmatprep.subr.mxu0 %v178
    %v180 = vand.u32 %v76, 4294901760
    %181 = vmatpush1.msra.mxu0 %v180
    %v182 = vand.u32 %v79, 4294901760
    %183 = vmatprep.subr.mxu0 %v182
    %v184 = vand.u32 %v78, 4294901760
    %185 = vmatpush1.msra.mxu0 %v184
    %v186 = vand.u32 %v81, 4294901760
    %187 = vmatprep.subr.mxu0 %v186
    %v188 = vand.u32 %v80, 4294901760
    %189 = vmatpush1.msra.mxu0 %v188
    %v190 = vand.u32 %v83, 4294901760
    %191 = vmatprep.subr.mxu0 %v190
    %v192 = vand.u32 %v82, 4294901760
    %193 = vmatpush1.msra.mxu0 %v192
    %v194 = vand.u32 %v85, 4294901760
    %195 = vmatprep.subr.mxu0 %v194
    %v196 = vand.u32 %v84, 4294901760
    %197 = vmatpush1.msra.mxu0 %v196
    %v198 = vand.u32 %v87, 4294901760
    %199 = vmatprep.subr.mxu0 %v198
    %v200 = vand.u32 %v86, 4294901760
    %201 = vmatpush1.msra.mxu0 %v200
    %v202 = vand.u32 %v89, 4294901760
    %203 = vmatprep.subr.mxu0 %v202
    %v204 = vand.u32 %v88, 4294901760
    %205 = vmatpush1.msra.mxu0 %v204
    %v206 = vand.u32 %v91, 4294901760
    %207 = vmatprep.subr.mxu0 %v206
    %v208 = vand.u32 %v90, 4294901760
    %209 = vmatpush1.msra.mxu0 %v208
    %v210 = vand.u32 %v93, 4294901760
    %211 = vmatprep.subr.mxu0 %v210
    %v212 = vand.u32 %v92, 4294901760
    %213 = vmatpush1.msra.mxu0 %v212
    %v214 = vand.u32 %v95, 4294901760
    %215 = vmatprep.subr.mxu0 %v214
    %v216 = vand.u32 %v94, 4294901760
    %217 = vmatpush1.msra.mxu0 %v216
    %v218 = vand.u32 %v97, 4294901760
    %219 = vmatprep.subr.mxu0 %v218
    %v220 = vand.u32 %v96, 4294901760
    %221 = vmatpush1.msra.mxu0 %v220
    %v222 = vand.u32 %v99, 4294901760
    %223 = vmatprep.subr.mxu0 %v222
    %v224 = vand.u32 %v98, 4294901760
    %225 = vmatpush1.msra.mxu0 %v224
    %v226 = vand.u32 %v101, 4294901760
    %227 = vmatprep.subr.mxu0 %v226
    %v228 = vand.u32 %v100, 4294901760
    %229 = vmatpush1.msra.mxu0 %v228
    %v230 = vand.u32 %v37, 4294901760
    %v231 = vsub.f32 %v37, %v230
    %v232 = vand.u32 %v231, 4294901760
    %v233 = vsub.f32 %v231, %v232
    %v234 = vand.u32 %v233, 4294901760
    %235 = vmatprep.mubr.f32.mxu0 %v234
    %v236 = vand.u32 %v36, 4294901760
    %v237 = vsub.f32 %v36, %v236
    %v238 = vand.u32 %v237, 4294901760
    %v239 = vsub.f32 %v237, %v238
    %v240 = vand.u32 %v239, 4294901760
    %241 = vmatmul.mubr.f32.gmra.mrb[0].mxu0 %v240
    %v242 = vpop.f32.mrb[0].mxu0
    %v243 = vadd.f32 0.0, %v242
    %v244 = vpop.f32.mrb[0].mxu0
    %v245 = vadd.f32 0.0, %v244
    %246 = vdwg.mxu0
    %v247 = vand.u32 %v39, 4294901760
    %v248 = vsub.f32 %v39, %v247
    %v249 = vand.u32 %v248, 4294901760
    %v250 = vsub.f32 %v248, %v249
    %v251 = vand.u32 %v250, 4294901760
    %252 = vmatprep.subr.mxu0 %v251
    %v253 = vand.u32 %v38, 4294901760
    %v254 = vsub.f32 %v38, %v253
    %v255 = vand.u32 %v254, 4294901760
    %v256 = vsub.f32 %v254, %v255
    %v257 = vand.u32 %v256, 4294901760
    %258 = vmatpush1.msra.mxu0 %v257
    %v259 = vand.u32 %v41, 4294901760
    %v260 = vsub.f32 %v41, %v259
    %v261 = vand.u32 %v260, 4294901760
    %v262 = vsub.f32 %v260, %v261
    %v263 = vand.u32 %v262, 4294901760
    %264 = vmatprep.subr.mxu0 %v263
    %v265 = vand.u32 %v40, 4294901760
    %v266 = vsub.f32 %v40, %v265
    %v267 = vand.u32 %v266, 4294901760
    %v268 = vsub.f32 %v266, %v267
    %v269 = vand.u32 %v268, 4294901760
    %270 = vmatpush1.msra.mxu0 %v269
    %v271 = vand.u32 %v43, 4294901760
    %v272 = vsub.f32 %v43, %v271
    %v273 = vand.u32 %v272, 4294901760
    %v274 = vsub.f32 %v272, %v273
    %v275 = vand.u32 %v274, 4294901760
    %276 = vmatprep.subr.mxu0 %v275
    %v277 = vand.u32 %v42, 4294901760
    %v278 = vsub.f32 %v42, %v277
    %v279 = vand.u32 %v278, 4294901760
    %v280 = vsub.f32 %v278, %v279
    %v281 = vand.u32 %v280, 4294901760
    %282 = vmatpush1.msra.mxu0 %v281
    %v283 = vand.u32 %v45, 4294901760
    %v284 = vsub.f32 %v45, %v283
    %v285 = vand.u32 %v284, 4294901760
    %v286 = vsub.f32 %v284, %v285
    %v287 = vand.u32 %v286, 4294901760
    %288 = vmatprep.subr.mxu0 %v287
    %v289 = vand.u32 %v44, 4294901760
    %v290 = vsub.f32 %v44, %v289
    %v291 = vand.u32 %v290, 4294901760
    %v292 = vsub.f32 %v290, %v291
    %v293 = vand.u32 %v292, 4294901760
    %294 = vmatpush1.msra.mxu0 %v293
    %v295 = vand.u32 %v47, 4294901760
    %v296 = vsub.f32 %v47, %v295
    %v297 = vand.u32 %v296, 4294901760
    %v298 = vsub.f32 %v296, %v297
    %v299 = vand.u32 %v298, 4294901760
    %300 = vmatprep.subr.mxu0 %v299
    %v301 = vand.u32 %v46, 4294901760
    %v302 = vsub.f32 %v46, %v301
    %v303 = vand.u32 %v302, 4294901760
    %v304 = vsub.f32 %v302, %v303
    %v305 = vand.u32 %v304, 4294901760
    %306 = vmatpush1.msra.mxu0 %v305
    %v307 = vand.u32 %v49, 4294901760
    %v308 = vsub.f32 %v49, %v307
    %v309 = vand.u32 %v308, 4294901760
    %v310 = vsub.f32 %v308, %v309
    %v311 = vand.u32 %v310, 4294901760
    %312 = vmatprep.subr.mxu0 %v311
    %v313 = vand.u32 %v48, 4294901760
    %v314 = vsub.f32 %v48, %v313
    %v315 = vand.u32 %v314, 4294901760
    %v316 = vsub.f32 %v314, %v315
    %v317 = vand.u32 %v316, 4294901760
    %318 = vmatpush1.msra.mxu0 %v317
    %v319 = vand.u32 %v51, 4294901760
    %v320 = vsub.f32 %v51, %v319
    %v321 = vand.u32 %v320, 4294901760
    %v322 = vsub.f32 %v320, %v321
    %v323 = vand.u32 %v322, 4294901760
    %324 = vmatprep.subr.mxu0 %v323
    %v325 = vand.u32 %v50, 4294901760
    %v326 = vsub.f32 %v50, %v325
    %v327 = vand.u32 %v326, 4294901760
    %v328 = vsub.f32 %v326, %v327
    %v329 = vand.u32 %v328, 4294901760
    %330 = vmatpush1.msra.mxu0 %v329
    %v331 = vand.u32 %v53, 4294901760
    %v332 = vsub.f32 %v53, %v331
    %v333 = vand.u32 %v332, 4294901760
    %v334 = vsub.f32 %v332, %v333
    %v335 = vand.u32 %v334, 4294901760
    %336 = vmatprep.subr.mxu0 %v335
    %v337 = vand.u32 %v52, 4294901760
    %v338 = vsub.f32 %v52, %v337
    %v339 = vand.u32 %v338, 4294901760
    %v340 = vsub.f32 %v338, %v339
    %v341 = vand.u32 %v340, 4294901760
    %342 = vmatpush1.msra.mxu0 %v341
    %v343 = vand.u32 %v55, 4294901760
    %v344 = vsub.f32 %v55, %v343
    %v345 = vand.u32 %v344, 4294901760
    %v346 = vsub.f32 %v344, %v345
    %v347 = vand.u32 %v346, 4294901760
    %348 = vmatprep.subr.mxu0 %v347
    %v349 = vand.u32 %v54, 4294901760
    %v350 = vsub.f32 %v54, %v349
    %v351 = vand.u32 %v350, 4294901760
    %v352 = vsub.f32 %v350, %v351
    %v353 = vand.u32 %v352, 4294901760
    %354 = vmatpush1.msra.mxu0 %v353
    %v355 = vand.u32 %v57, 4294901760
    %v356 = vsub.f32 %v57, %v355
    %v357 = vand.u32 %v356, 4294901760
    %v358 = vsub.f32 %v356, %v357
    %v359 = vand.u32 %v358, 4294901760
    %360 = vmatprep.subr.mxu0 %v359
    %v361 = vand.u32 %v56, 4294901760
    %v362 = vsub.f32 %v56, %v361
    %v363 = vand.u32 %v362, 4294901760
    %v364 = vsub.f32 %v362, %v363
    %v365 = vand.u32 %v364, 4294901760
    %366 = vmatpush1.msra.mxu0 %v365
    %v367 = vand.u32 %v59, 4294901760
    %v368 = vsub.f32 %v59, %v367
    %v369 = vand.u32 %v368, 4294901760
    %v370 = vsub.f32 %v368, %v369
    %v371 = vand.u32 %v370, 4294901760
    %372 = vmatprep.subr.mxu0 %v371
    %v373 = vand.u32 %v58, 4294901760
    %v374 = vsub.f32 %v58, %v373
    %v375 = vand.u32 %v374, 4294901760
    %v376 = vsub.f32 %v374, %v375
    %v377 = vand.u32 %v376, 4294901760
    %378 = vmatpush1.msra.mxu0 %v377
    %v379 = vand.u32 %v61, 4294901760
    %v380 = vsub.f32 %v61, %v379
    %v381 = vand.u32 %v380, 4294901760
    %v382 = vsub.f32 %v380, %v381
    %v383 = vand.u32 %v382, 4294901760
    %384 = vmatprep.subr.mxu0 %v383
    %v385 = vand.u32 %v60, 4294901760
    %v386 = vsub.f32 %v60, %v385
    %v387 = vand.u32 %v386, 4294901760
    %v388 = vsub.f32 %v386, %v387
    %v389 = vand.u32 %v388, 4294901760
    %390 = vmatpush1.msra.mxu0 %v389
    %v391 = vand.u32 %v63, 4294901760
    %v392 = vsub.f32 %v63, %v391
    %v393 = vand.u32 %v392, 4294901760
    %v394 = vsub.f32 %v392, %v393
    %v395 = vand.u32 %v394, 4294901760
    %396 = vmatprep.subr.mxu0 %v395
    %v397 = vand.u32 %v62, 4294901760
    %v398 = vsub.f32 %v62, %v397
    %v399 = vand.u32 %v398, 4294901760
    %v400 = vsub.f32 %v398, %v399
    %v401 = vand.u32 %v400, 4294901760
    %402 = vmatpush1.msra.mxu0 %v401
    %v403 = vand.u32 %v65, 4294901760
    %v404 = vsub.f32 %v65, %v403
    %v405 = vand.u32 %v404, 4294901760
    %v406 = vsub.f32 %v404, %v405
    %v407 = vand.u32 %v406, 4294901760
    %408 = vmatprep.subr.mxu0 %v407
    %v409 = vand.u32 %v64, 4294901760
    %v410 = vsub.f32 %v64, %v409
    %v411 = vand.u32 %v410, 4294901760
    %v412 = vsub.f32 %v410, %v411
    %v413 = vand.u32 %v412, 4294901760
    %414 = vmatpush1.msra.mxu0 %v413
    %v415 = vand.u32 %v67, 4294901760
    %v416 = vsub.f32 %v67, %v415
    %v417 = vand.u32 %v416, 4294901760
    %v418 = vsub.f32 %v416, %v417
    %v419 = vand.u32 %v418, 4294901760
    %420 = vmatprep.subr.mxu0 %v419
    %v421 = vand.u32 %v66, 4294901760
    %v422 = vsub.f32 %v66, %v421
    %v423 = vand.u32 %v422, 4294901760
    %v424 = vsub.f32 %v422, %v423
    %v425 = vand.u32 %v424, 4294901760
    %426 = vmatpush1.msra.mxu0 %v425
    %v427 = vand.u32 %v69, 4294901760
    %v428 = vsub.f32 %v69, %v427
    %v429 = vand.u32 %v428, 4294901760
    %v430 = vsub.f32 %v428, %v429
    %v431 = vand.u32 %v430, 4294901760
    %432 = vmatprep.subr.mxu0 %v431
    %v433 = vand.u32 %v68, 4294901760
    %v434 = vsub.f32 %v68, %v433
    %v435 = vand.u32 %v434, 4294901760
    %v436 = vsub.f32 %v434, %v435
    %v437 = vand.u32 %v436, 4294901760
    %438 = vmatpush1.msra.mxu0 %v437
    %v439 = vand.u32 %v71, 4294901760
    %v440 = vsub.f32 %v71, %v439
    %v441 = vand.u32 %v440, 4294901760
    %v442 = vsub.f32 %v440, %v441
    %v443 = vand.u32 %v442, 4294901760
    %444 = vmatprep.subr.mxu0 %v443
    %v445 = vand.u32 %v70, 4294901760
    %v446 = vsub.f32 %v70, %v445
    %v447 = vand.u32 %v446, 4294901760
    %v448 = vsub.f32 %v446, %v447
    %v449 = vand.u32 %v448, 4294901760
    %450 = vmatpush1.msra.mxu0 %v449
    %v451 = vand.u32 %v73, 4294901760
    %v452 = vsub.f32 %v73, %v451
    %v453 = vand.u32 %v452, 4294901760
    %v454 = vsub.f32 %v452, %v453
    %v455 = vand.u32 %v454, 4294901760
    %456 = vmatprep.subr.mxu0 %v455
    %v457 = vand.u32 %v72, 4294901760
    %v458 = vsub.f32 %v72, %v457
    %v459 = vand.u32 %v458, 4294901760
    %v460 = vsub.f32 %v458, %v459
    %v461 = vand.u32 %v460, 4294901760
    %462 = vmatpush1.msra.mxu0 %v461
    %v463 = vand.u32 %v75, 4294901760
    %v464 = vsub.f32 %v75, %v463
    %v465 = vand.u32 %v464, 4294901760
    %v466 = vsub.f32 %v464, %v465
    %v467 = vand.u32 %v466, 4294901760
    %468 = vmatprep.subr.mxu0 %v467
    %v469 = vand.u32 %v74, 4294901760
    %v470 = vsub.f32 %v74, %v469
    %v471 = vand.u32 %v470, 4294901760
    %v472 = vsub.f32 %v470, %v471
    %v473 = vand.u32 %v472, 4294901760
    %474 = vmatpush1.msra.mxu0 %v473
    %v475 = vand.u32 %v77, 4294901760
    %v476 = vsub.f32 %v77, %v475
    %v477 = vand.u32 %v476, 4294901760
    %v478 = vsub.f32 %v476, %v477
    %v479 = vand.u32 %v478, 4294901760
    %480 = vmatprep.subr.mxu0 %v479
    %v481 = vand.u32 %v76, 4294901760
    %v482 = vsub.f32 %v76, %v481
    %v483 = vand.u32 %v482, 4294901760
    %v484 = vsub.f32 %v482, %v483
    %v485 = vand.u32 %v484, 4294901760
    %486 = vmatpush1.msra.mxu0 %v485
    %v487 = vand.u32 %v79, 4294901760
    %v488 = vsub.f32 %v79, %v487
    %v489 = vand.u32 %v488, 4294901760
    %v490 = vsub.f32 %v488, %v489
    %v491 = vand.u32 %v490, 4294901760
    %492 = vmatprep.subr.mxu0 %v491
    %v493 = vand.u32 %v78, 4294901760
    %v494 = vsub.f32 %v78, %v493
    %v495 = vand.u32 %v494, 4294901760
    %v496 = vsub.f32 %v494, %v495
    %v497 = vand.u32 %v496, 4294901760
    %498 = vmatpush1.msra.mxu0 %v497
    %v499 = vand.u32 %v81, 4294901760
    %v500 = vsub.f32 %v81, %v499
    %v501 = vand.u32 %v500, 4294901760
    %v502 = vsub.f32 %v500, %v501
    %v503 = vand.u32 %v502, 4294901760
    %504 = vmatprep.subr.mxu0 %v503
    %v505 = vand.u32 %v80, 4294901760
    %v506 = vsub.f32 %v80, %v505
    %v507 = vand.u32 %v506, 4294901760
    %v508 = vsub.f32 %v506, %v507
    %v509 = vand.u32 %v508, 4294901760
    %510 = vmatpush1.msra.mxu0 %v509
    %v511 = vand.u32 %v83, 4294901760
    %v512 = vsub.f32 %v83, %v511
    %v513 = vand.u32 %v512, 4294901760
    %v514 = vsub.f32 %v512, %v513
    %v515 = vand.u32 %v514, 4294901760
    %516 = vmatprep.subr.mxu0 %v515
    %v517 = vand.u32 %v82, 4294901760
    %v518 = vsub.f32 %v82, %v517
    %v519 = vand.u32 %v518, 4294901760
    %v520 = vsub.f32 %v518, %v519
    %v521 = vand.u32 %v520, 4294901760
    %522 = vmatpush1.msra.mxu0 %v521
    %v523 = vand.u32 %v85, 4294901760
    %v524 = vsub.f32 %v85, %v523
    %v525 = vand.u32 %v524, 4294901760
    %v526 = vsub.f32 %v524, %v525
    %v527 = vand.u32 %v526, 4294901760
    %528 = vmatprep.subr.mxu0 %v527
    %v529 = vand.u32 %v84, 4294901760
    %v530 = vsub.f32 %v84, %v529
    %v531 = vand.u32 %v530, 4294901760
    %v532 = vsub.f32 %v530, %v531
    %v533 = vand.u32 %v532, 4294901760
    %534 = vmatpush1.msra.mxu0 %v533
    %v535 = vand.u32 %v87, 4294901760
    %v536 = vsub.f32 %v87, %v535
    %v537 = vand.u32 %v536, 4294901760
    %v538 = vsub.f32 %v536, %v537
    %v539 = vand.u32 %v538, 4294901760
    %540 = vmatprep.subr.mxu0 %v539
    %v541 = vand.u32 %v86, 4294901760
    %v542 = vsub.f32 %v86, %v541
    %v543 = vand.u32 %v542, 4294901760
    %v544 = vsub.f32 %v542, %v543
    %v545 = vand.u32 %v544, 4294901760
    %546 = vmatpush1.msra.mxu0 %v545
    %v547 = vand.u32 %v89, 4294901760
    %v548 = vsub.f32 %v89, %v547
    %v549 = vand.u32 %v548, 4294901760
    %v550 = vsub.f32 %v548, %v549
    %v551 = vand.u32 %v550, 4294901760
    %552 = vmatprep.subr.mxu0 %v551
    %v553 = vand.u32 %v88, 4294901760
    %v554 = vsub.f32 %v88, %v553
    %v555 = vand.u32 %v554, 4294901760
    %v556 = vsub.f32 %v554, %v555
    %v557 = vand.u32 %v556, 4294901760
    %558 = vmatpush1.msra.mxu0 %v557
    %v559 = vand.u32 %v91, 4294901760
    %v560 = vsub.f32 %v91, %v559
    %v561 = vand.u32 %v560, 4294901760
    %v562 = vsub.f32 %v560, %v561
    %v563 = vand.u32 %v562, 4294901760
    %564 = vmatprep.subr.mxu0 %v563
    %v565 = vand.u32 %v90, 4294901760
    %v566 = vsub.f32 %v90, %v565
    %v567 = vand.u32 %v566, 4294901760
    %v568 = vsub.f32 %v566, %v567
    %v569 = vand.u32 %v568, 4294901760
    %570 = vmatpush1.msra.mxu0 %v569
    %v571 = vand.u32 %v93, 4294901760
    %v572 = vsub.f32 %v93, %v571
    %v573 = vand.u32 %v572, 4294901760
    %v574 = vsub.f32 %v572, %v573
    %v575 = vand.u32 %v574, 4294901760
    %576 = vmatprep.subr.mxu0 %v575
    %v577 = vand.u32 %v92, 4294901760
    %v578 = vsub.f32 %v92, %v577
    %v579 = vand.u32 %v578, 4294901760
    %v580 = vsub.f32 %v578, %v579
    %v581 = vand.u32 %v580, 4294901760
    %582 = vmatpush1.msra.mxu0 %v581
    %v583 = vand.u32 %v95, 4294901760
    %v584 = vsub.f32 %v95, %v583
    %v585 = vand.u32 %v584, 4294901760
    %v586 = vsub.f32 %v584, %v585
    %v587 = vand.u32 %v586, 4294901760
    %588 = vmatprep.subr.mxu0 %v587
    %v589 = vand.u32 %v94, 4294901760
    %v590 = vsub.f32 %v94, %v589
    %v591 = vand.u32 %v590, 4294901760
    %v592 = vsub.f32 %v590, %v591
    %v593 = vand.u32 %v592, 4294901760
    %594 = vmatpush1.msra.mxu0 %v593
    %v595 = vand.u32 %v97, 4294901760
    %v596 = vsub.f32 %v97, %v595
    %v597 = vand.u32 %v596, 4294901760
    %v598 = vsub.f32 %v596, %v597
    %v599 = vand.u32 %v598, 4294901760
    %600 = vmatprep.subr.mxu0 %v599
    %v601 = vand.u32 %v96, 4294901760
    %v602 = vsub.f32 %v96, %v601
    %v603 = vand.u32 %v602, 4294901760
    %v604 = vsub.f32 %v602, %v603
    %v605 = vand.u32 %v604, 4294901760
    %606 = vmatpush1.msra.mxu0 %v605
    %v607 = vand.u32 %v99, 4294901760
    %v608 = vsub.f32 %v99, %v607
    %v609 = vand.u32 %v608, 4294901760
    %v610 = vsub.f32 %v608, %v609
    %v611 = vand.u32 %v610, 4294901760
    %612 = vmatprep.subr.mxu0 %v611
    %v613 = vand.u32 %v98, 4294901760
    %v614 = vsub.f32 %v98, %v613
    %v615 = vand.u32 %v614, 4294901760
    %v616 = vsub.f32 %v614, %v615
    %v617 = vand.u32 %v616, 4294901760
    %618 = vmatpush1.msra.mxu0 %v617
    %v619 = vand.u32 %v101, 4294901760
    %v620 = vsub.f32 %v101, %v619
    %v621 = vand.u32 %v620, 4294901760
    %v622 = vsub.f32 %v620, %v621
    %v623 = vand.u32 %v622, 4294901760
    %624 = vmatprep.subr.mxu0 %v623
    %v625 = vand.u32 %v100, 4294901760
    %v626 = vsub.f32 %v100, %v625
    %v627 = vand.u32 %v626, 4294901760
    %v628 = vsub.f32 %v626, %v627
    %v629 = vand.u32 %v628, 4294901760
    %630 = vmatpush1.msra.mxu0 %v629
    %v631 = vand.u32 %v37, 4294901760
    %632 = vmatprep.mubr.f32.mxu0 %v631
    %v633 = vand.u32 %v36, 4294901760
    %634 = vmatmul.mubr.f32.gmra.mrb[0].mxu0 %v633
    %v635 = vpop.f32.mrb[0].mxu0
    %v636 = vadd.f32 %v243, %v635
    %v637 = vpop.f32.mrb[0].mxu0
    %v638 = vadd.f32 %v245, %v637
    %639 = vdwg.mxu0
    %v640 = vand.u32 %v39, 4294901760
    %v641 = vsub.f32 %v39, %v640
    %642 = vmatprep.subr.mxu0 %v641
    %v643 = vand.u32 %v38, 4294901760
    %v644 = vsub.f32 %v38, %v643
    %645 = vmatpush1.msra.mxu0 %v644
    %v646 = vand.u32 %v41, 4294901760
    %v647 = vsub.f32 %v41, %v646
    %648 = vmatprep.subr.mxu0 %v647
    %v649 = vand.u32 %v40, 4294901760
    %v650 = vsub.f32 %v40, %v649
    %651 = vmatpush1.msra.mxu0 %v650
    %v652 = vand.u32 %v43, 4294901760
    %v653 = vsub.f32 %v43, %v652
    %654 = vmatprep.subr.mxu0 %v653
    %v655 = vand.u32 %v42, 4294901760
    %v656 = vsub.f32 %v42, %v655
    %657 = vmatpush1.msra.mxu0 %v656
    %v658 = vand.u32 %v45, 4294901760
    %v659 = vsub.f32 %v45, %v658
    %660 = vmatprep.subr.mxu0 %v659
    %v661 = vand.u32 %v44, 4294901760
    %v662 = vsub.f32 %v44, %v661
    %663 = vmatpush1.msra.mxu0 %v662
    %v664 = vand.u32 %v47, 4294901760
    %v665 = vsub.f32 %v47, %v664
    %666 = vmatprep.subr.mxu0 %v665
    %v667 = vand.u32 %v46, 4294901760
    %v668 = vsub.f32 %v46, %v667
    %669 = vmatpush1.msra.mxu0 %v668
    %v670 = vand.u32 %v49, 4294901760
    %v671 = vsub.f32 %v49, %v670
    %672 = vmatprep.subr.mxu0 %v671
    %v673 = vand.u32 %v48, 4294901760
    %v674 = vsub.f32 %v48, %v673
    %675 = vmatpush1.msra.mxu0 %v674
    %v676 = vand.u32 %v51, 4294901760
    %v677 = vsub.f32 %v51, %v676
    %678 = vmatprep.subr.mxu0 %v677
    %v679 = vand.u32 %v50, 4294901760
    %v680 = vsub.f32 %v50, %v679
    %681 = vmatpush1.msra.mxu0 %v680
    %v682 = vand.u32 %v53, 4294901760
    %v683 = vsub.f32 %v53, %v682
    %684 = vmatprep.subr.mxu0 %v683
    %v685 = vand.u32 %v52, 4294901760
    %v686 = vsub.f32 %v52, %v685
    %687 = vmatpush1.msra.mxu0 %v686
    %v688 = vand.u32 %v55, 4294901760
    %v689 = vsub.f32 %v55, %v688
    %690 = vmatprep.subr.mxu0 %v689
    %v691 = vand.u32 %v54, 4294901760
    %v692 = vsub.f32 %v54, %v691
    %693 = vmatpush1.msra.mxu0 %v692
    %v694 = vand.u32 %v57, 4294901760
    %v695 = vsub.f32 %v57, %v694
    %696 = vmatprep.subr.mxu0 %v695
    %v697 = vand.u32 %v56, 4294901760
    %v698 = vsub.f32 %v56, %v697
    %699 = vmatpush1.msra.mxu0 %v698
    %v700 = vand.u32 %v59, 4294901760
    %v701 = vsub.f32 %v59, %v700
    %702 = vmatprep.subr.mxu0 %v701
    %v703 = vand.u32 %v58, 4294901760
    %v704 = vsub.f32 %v58, %v703
    %705 = vmatpush1.msra.mxu0 %v704
    %v706 = vand.u32 %v61, 4294901760
    %v707 = vsub.f32 %v61, %v706
    %708 = vmatprep.subr.mxu0 %v707
    %v709 = vand.u32 %v60, 4294901760
    %v710 = vsub.f32 %v60, %v709
    %711 = vmatpush1.msra.mxu0 %v710
    %v712 = vand.u32 %v63, 4294901760
    %v713 = vsub.f32 %v63, %v712
    %714 = vmatprep.subr.mxu0 %v713
    %v715 = vand.u32 %v62, 4294901760
    %v716 = vsub.f32 %v62, %v715
    %717 = vmatpush1.msra.mxu0 %v716
    %v718 = vand.u32 %v65, 4294901760
    %v719 = vsub.f32 %v65, %v718
    %720 = vmatprep.subr.mxu0 %v719
    %v721 = vand.u32 %v64, 4294901760
    %v722 = vsub.f32 %v64, %v721
    %723 = vmatpush1.msra.mxu0 %v722
    %v724 = vand.u32 %v67, 4294901760
    %v725 = vsub.f32 %v67, %v724
    %726 = vmatprep.subr.mxu0 %v725
    %v727 = vand.u32 %v66, 4294901760
    %v728 = vsub.f32 %v66, %v727
    %729 = vmatpush1.msra.mxu0 %v728
    %v730 = vand.u32 %v69, 4294901760
    %v731 = vsub.f32 %v69, %v730
    %732 = vmatprep.subr.mxu0 %v731
    %v733 = vand.u32 %v68, 4294901760
    %v734 = vsub.f32 %v68, %v733
    %735 = vmatpush1.msra.mxu0 %v734
    %v736 = vand.u32 %v71, 4294901760
    %v737 = vsub.f32 %v71, %v736
    %738 = vmatprep.subr.mxu0 %v737
    %v739 = vand.u32 %v70, 4294901760
    %v740 = vsub.f32 %v70, %v739
    %741 = vmatpush1.msra.mxu0 %v740
    %v742 = vand.u32 %v73, 4294901760
    %v743 = vsub.f32 %v73, %v742
    %744 = vmatprep.subr.mxu0 %v743
    %v745 = vand.u32 %v72, 4294901760
    %v746 = vsub.f32 %v72, %v745
    %747 = vmatpush1.msra.mxu0 %v746
    %v748 = vand.u32 %v75, 4294901760
    %v749 = vsub.f32 %v75, %v748
    %750 = vmatprep.subr.mxu0 %v749
    %v751 = vand.u32 %v74, 4294901760
    %v752 = vsub.f32 %v74, %v751
    %753 = vmatpush1.msra.mxu0 %v752
    %v754 = vand.u32 %v77, 4294901760
    %v755 = vsub.f32 %v77, %v754
    %756 = vmatprep.subr.mxu0 %v755
    %v757 = vand.u32 %v76, 4294901760
    %v758 = vsub.f32 %v76, %v757
    %759 = vmatpush1.msra.mxu0 %v758
    %v760 = vand.u32 %v79, 4294901760
    %v761 = vsub.f32 %v79, %v760
    %762 = vmatprep.subr.mxu0 %v761
    %v763 = vand.u32 %v78, 4294901760
    %v764 = vsub.f32 %v78, %v763
    %765 = vmatpush1.msra.mxu0 %v764
    %v766 = vand.u32 %v81, 4294901760
    %v767 = vsub.f32 %v81, %v766
    %768 = vmatprep.subr.mxu0 %v767
    %v769 = vand.u32 %v80, 4294901760
    %v770 = vsub.f32 %v80, %v769
    %771 = vmatpush1.msra.mxu0 %v770
    %v772 = vand.u32 %v83, 4294901760
    %v773 = vsub.f32 %v83, %v772
    %774 = vmatprep.subr.mxu0 %v773
    %v775 = vand.u32 %v82, 4294901760
    %v776 = vsub.f32 %v82, %v775
    %777 = vmatpush1.msra.mxu0 %v776
    %v778 = vand.u32 %v85, 4294901760
    %v779 = vsub.f32 %v85, %v778
    %780 = vmatprep.subr.mxu0 %v779
    %v781 = vand.u32 %v84, 4294901760
    %v782 = vsub.f32 %v84, %v781
    %783 = vmatpush1.msra.mxu0 %v782
    %v784 = vand.u32 %v87, 4294901760
    %v785 = vsub.f32 %v87, %v784
    %786 = vmatprep.subr.mxu0 %v785
    %v787 = vand.u32 %v86, 4294901760
    %v788 = vsub.f32 %v86, %v787
    %789 = vmatpush1.msra.mxu0 %v788
    %v790 = vand.u32 %v89, 4294901760
    %v791 = vsub.f32 %v89, %v790
    %792 = vmatprep.subr.mxu0 %v791
    %v793 = vand.u32 %v88, 4294901760
    %v794 = vsub.f32 %v88, %v793
    %795 = vmatpush1.msra.mxu0 %v794
    %v796 = vand.u32 %v91, 4294901760
    %v797 = vsub.f32 %v91, %v796
    %798 = vmatprep.subr.mxu0 %v797
    %v799 = vand.u32 %v90, 4294901760
    %v800 = vsub.f32 %v90, %v799
    %801 = vmatpush1.msra.mxu0 %v800
    %v802 = vand.u32 %v93, 4294901760
    %v803 = vsub.f32 %v93, %v802
    %804 = vmatprep.subr.mxu0 %v803
    %v805 = vand.u32 %v92, 4294901760
    %v806 = vsub.f32 %v92, %v805
    %807 = vmatpush1.msra.mxu0 %v806
    %v808 = vand.u32 %v95, 4294901760
    %v809 = vsub.f32 %v95, %v808
    %810 = vmatprep.subr.mxu0 %v809
    %v811 = vand.u32 %v94, 4294901760
    %v812 = vsub.f32 %v94, %v811
    %813 = vmatpush1.msra.mxu0 %v812
    %v814 = vand.u32 %v97, 4294901760
    %v815 = vsub.f32 %v97, %v814
    %816 = vmatprep.subr.mxu0 %v815
    %v817 = vand.u32 %v96, 4294901760
    %v818 = vsub.f32 %v96, %v817
    %819 = vmatpush1.msra.mxu0 %v818
    %v820 = vand.u32 %v99, 4294901760
    %v821 = vsub.f32 %v99, %v820
    %822 = vmatprep.subr.mxu0 %v821
    %v823 = vand.u32 %v98, 4294901760
    %v824 = vsub.f32 %v98, %v823
    %825 = vmatpush1.msra.mxu0 %v824
    %v826 = vand.u32 %v101, 4294901760
    %v827 = vsub.f32 %v101, %v826
    %828 = vmatprep.subr.mxu0 %v827
    %v829 = vand.u32 %v100, 4294901760
    %v830 = vsub.f32 %v100, %v829
    %831 = vmatpush1.msra.mxu0 %v830
    %v832 = vand.u32 %v37, 4294901760
    %v833 = vsub.f32 %v37, %v832
    %834 = vmatprep.mubr.f32.mxu0 %v833
    %v835 = vand.u32 %v36, 4294901760
    %v836 = vsub.f32 %v36, %v835
    %837 = vmatmul.mubr.f32.gmra.mrb[0].mxu0 %v836
    %v838 = vpop.f32.mrb[0].mxu0
    %v839 = vadd.f32 %v636, %v838
    %v840 = vpop.f32.mrb[0].mxu0
    %v841 = vadd.f32 %v638, %v840
    %842 = vdwg.mxu0
    %v843 = vand.u32 %v39, 4294901760
    %844 = vmatprep.subr.mxu0 %v843
    %v845 = vand.u32 %v38, 4294901760
    %846 = vmatpush1.msra.mxu0 %v845
    %v847 = vand.u32 %v41, 4294901760
    %848 = vmatprep.subr.mxu0 %v847
    %v849 = vand.u32 %v40, 4294901760
    %850 = vmatpush1.msra.mxu0 %v849
    %v851 = vand.u32 %v43, 4294901760
    %852 = vmatprep.subr.mxu0 %v851
    %v853 = vand.u32 %v42, 4294901760
    %854 = vmatpush1.msra.mxu0 %v853
    %v855 = vand.u32 %v45, 4294901760
    %856 = vmatprep.subr.mxu0 %v855
    %v857 = vand.u32 %v44, 4294901760
    %858 = vmatpush1.msra.mxu0 %v857
    %v859 = vand.u32 %v47, 4294901760
    %860 = vmatprep.subr.mxu0 %v859
    %v861 = vand.u32 %v46, 4294901760
    %862 = vmatpush1.msra.mxu0 %v861
    %v863 = vand.u32 %v49, 4294901760
    %864 = vmatprep.subr.mxu0 %v863
    %v865 = vand.u32 %v48, 4294901760
    %866 = vmatpush1.msra.mxu0 %v865
    %v867 = vand.u32 %v51, 4294901760
    %868 = vmatprep.subr.mxu0 %v867
    %v869 = vand.u32 %v50, 4294901760
    %870 = vmatpush1.msra.mxu0 %v869
    %v871 = vand.u32 %v53, 4294901760
    %872 = vmatprep.subr.mxu0 %v871
    %v873 = vand.u32 %v52, 4294901760
    %874 = vmatpush1.msra.mxu0 %v873
    %v875 = vand.u32 %v55, 4294901760
    %876 = vmatprep.subr.mxu0 %v875
    %v877 = vand.u32 %v54, 4294901760
    %878 = vmatpush1.msra.mxu0 %v877
    %v879 = vand.u32 %v57, 4294901760
    %880 = vmatprep.subr.mxu0 %v879
    %v881 = vand.u32 %v56, 4294901760
    %882 = vmatpush1.msra.mxu0 %v881
    %v883 = vand.u32 %v59, 4294901760
    %884 = vmatprep.subr.mxu0 %v883
    %v885 = vand.u32 %v58, 4294901760
    %886 = vmatpush1.msra.mxu0 %v885
    %v887 = vand.u32 %v61, 4294901760
    %888 = vmatprep.subr.mxu0 %v887
    %v889 = vand.u32 %v60, 4294901760
    %890 = vmatpush1.msra.mxu0 %v889
    %v891 = vand.u32 %v63, 4294901760
    %892 = vmatprep.subr.mxu0 %v891
    %v893 = vand.u32 %v62, 4294901760
    %894 = vmatpush1.msra.mxu0 %v893
    %v895 = vand.u32 %v65, 4294901760
    %896 = vmatprep.subr.mxu0 %v895
    %v897 = vand.u32 %v64, 4294901760
    %898 = vmatpush1.msra.mxu0 %v897
    %v899 = vand.u32 %v67, 4294901760
    %900 = vmatprep.subr.mxu0 %v899
    %v901 = vand.u32 %v66, 4294901760
    %902 = vmatpush1.msra.mxu0 %v901
    %v903 = vand.u32 %v69, 4294901760
    %904 = vmatprep.subr.mxu0 %v903
    %v905 = vand.u32 %v68, 4294901760
    %906 = vmatpush1.msra.mxu0 %v905
    %v907 = vand.u32 %v71, 4294901760
    %908 = vmatprep.subr.mxu0 %v907
    %v909 = vand.u32 %v70, 4294901760
    %910 = vmatpush1.msra.mxu0 %v909
    %v911 = vand.u32 %v73, 4294901760
    %912 = vmatprep.subr.mxu0 %v911
    %v913 = vand.u32 %v72, 4294901760
    %914 = vmatpush1.msra.mxu0 %v913
    %v915 = vand.u32 %v75, 4294901760
    %916 = vmatprep.subr.mxu0 %v915
    %v917 = vand.u32 %v74, 4294901760
    %918 = vmatpush1.msra.mxu0 %v917
    %v919 = vand.u32 %v77, 4294901760
    %920 = vmatprep.subr.mxu0 %v919
    %v921 = vand.u32 %v76, 4294901760
    %922 = vmatpush1.msra.mxu0 %v921
    %v923 = vand.u32 %v79, 4294901760
    %924 = vmatprep.subr.mxu0 %v923
    %v925 = vand.u32 %v78, 4294901760
    %926 = vmatpush1.msra.mxu0 %v925
    %v927 = vand.u32 %v81, 4294901760
    %928 = vmatprep.subr.mxu0 %v927
    %v929 = vand.u32 %v80, 4294901760
    %930 = vmatpush1.msra.mxu0 %v929
    %v931 = vand.u32 %v83, 4294901760
    %932 = vmatprep.subr.mxu0 %v931
    %v933 = vand.u32 %v82, 4294901760
    %934 = vmatpush1.msra.mxu0 %v933
    %v935 = vand.u32 %v85, 4294901760
    %936 = vmatprep.subr.mxu0 %v935
    %v937 = vand.u32 %v84, 4294901760
    %938 = vmatpush1.msra.mxu0 %v937
    %v939 = vand.u32 %v87, 4294901760
    %940 = vmatprep.subr.mxu0 %v939
    %v941 = vand.u32 %v86, 4294901760
    %942 = vmatpush1.msra.mxu0 %v941
    %v943 = vand.u32 %v89, 4294901760
    %944 = vmatprep.subr.mxu0 %v943
    %v945 = vand.u32 %v88, 4294901760
    %946 = vmatpush1.msra.mxu0 %v945
    %v947 = vand.u32 %v91, 4294901760
    %948 = vmatprep.subr.mxu0 %v947
    %v949 = vand.u32 %v90, 4294901760
    %950 = vmatpush1.msra.mxu0 %v949
    %v951 = vand.u32 %v93, 4294901760
    %952 = vmatprep.subr.mxu0 %v951
    %v953 = vand.u32 %v92, 4294901760
    %954 = vmatpush1.msra.mxu0 %v953
    %v955 = vand.u32 %v95, 4294901760
    %956 = vmatprep.subr.mxu0 %v955
    %v957 = vand.u32 %v94, 4294901760
    %958 = vmatpush1.msra.mxu0 %v957
    %v959 = vand.u32 %v97, 4294901760
    %960 = vmatprep.subr.mxu0 %v959
    %v961 = vand.u32 %v96, 4294901760
    %962 = vmatpush1.msra.mxu0 %v961
    %v963 = vand.u32 %v99, 4294901760
    %964 = vmatprep.subr.mxu0 %v963
    %v965 = vand.u32 %v98, 4294901760
    %966 = vmatpush1.msra.mxu0 %v965
    %v967 = vand.u32 %v101, 4294901760
    %968 = vmatprep.subr.mxu0 %v967
    %v969 = vand.u32 %v100, 4294901760
    %970 = vmatpush1.msra.mxu0 %v969
    %v971 = vand.u32 %v37, 4294901760
    %v972 = vsub.f32 %v37, %v971
    %v973 = vand.u32 %v972, 4294901760
    %974 = vmatprep.mubr.f32.mxu0 %v973
    %v975 = vand.u32 %v36, 4294901760
    %v976 = vsub.f32 %v36, %v975
    %v977 = vand.u32 %v976, 4294901760
    %978 = vmatmul.mubr.f32.gmra.mrb[0].mxu0 %v977
    %v979 = vpop.f32.mrb[0].mxu0
    %v980 = vadd.f32 %v839, %v979
    %v981 = vpop.f32.mrb[0].mxu0
    %v982 = vadd.f32 %v841, %v981
    %983 = vdwg.mxu0
    %v984 = vand.u32 %v39, 4294901760
    %v985 = vsub.f32 %v39, %v984
    %v986 = vand.u32 %v985, 4294901760
    %987 = vmatprep.subr.mxu0 %v986
    %v988 = vand.u32 %v38, 4294901760
    %v989 = vsub.f32 %v38, %v988
    %v990 = vand.u32 %v989, 4294901760
    %991 = vmatpush1.msra.mxu0 %v990
    %v992 = vand.u32 %v41, 4294901760
    %v993 = vsub.f32 %v41, %v992
    %v994 = vand.u32 %v993, 4294901760
    %995 = vmatprep.subr.mxu0 %v994
    %v996 = vand.u32 %v40, 4294901760
    %v997 = vsub.f32 %v40, %v996
    %v998 = vand.u32 %v997, 4294901760
    %999 = vmatpush1.msra.mxu0 %v998
    %v1000 = vand.u32 %v43, 4294901760
    %v1001 = vsub.f32 %v43, %v1000
    %v1002 = vand.u32 %v1001, 4294901760
    %1003 = vmatprep.subr.mxu0 %v1002
    %v1004 = vand.u32 %v42, 4294901760
    %v1005 = vsub.f32 %v42, %v1004
    %v1006 = vand.u32 %v1005, 4294901760
    %1007 = vmatpush1.msra.mxu0 %v1006
    %v1008 = vand.u32 %v45, 4294901760
    %v1009 = vsub.f32 %v45, %v1008
    %v1010 = vand.u32 %v1009, 4294901760
    %1011 = vmatprep.subr.mxu0 %v1010
    %v1012 = vand.u32 %v44, 4294901760
    %v1013 = vsub.f32 %v44, %v1012
    %v1014 = vand.u32 %v1013, 4294901760
    %1015 = vmatpush1.msra.mxu0 %v1014
    %v1016 = vand.u32 %v47, 4294901760
    %v1017 = vsub.f32 %v47, %v1016
    %v1018 = vand.u32 %v1017, 4294901760
    %1019 = vmatprep.subr.mxu0 %v1018
    %v1020 = vand.u32 %v46, 4294901760
    %v1021 = vsub.f32 %v46, %v1020
    %v1022 = vand.u32 %v1021, 4294901760
    %1023 = vmatpush1.msra.mxu0 %v1022
    %v1024 = vand.u32 %v49, 4294901760
    %v1025 = vsub.f32 %v49, %v1024
    %v1026 = vand.u32 %v1025, 4294901760
    %1027 = vmatprep.subr.mxu0 %v1026
    %v1028 = vand.u32 %v48, 4294901760
    %v1029 = vsub.f32 %v48, %v1028
    %v1030 = vand.u32 %v1029, 4294901760
    %1031 = vmatpush1.msra.mxu0 %v1030
    %v1032 = vand.u32 %v51, 4294901760
    %v1033 = vsub.f32 %v51, %v1032
    %v1034 = vand.u32 %v1033, 4294901760
    %1035 = vmatprep.subr.mxu0 %v1034
    %v1036 = vand.u32 %v50, 4294901760
    %v1037 = vsub.f32 %v50, %v1036
    %v1038 = vand.u32 %v1037, 4294901760
    %1039 = vmatpush1.msra.mxu0 %v1038
    %v1040 = vand.u32 %v53, 4294901760
    %v1041 = vsub.f32 %v53, %v1040
    %v1042 = vand.u32 %v1041, 4294901760
    %1043 = vmatprep.subr.mxu0 %v1042
    %v1044 = vand.u32 %v52, 4294901760
    %v1045 = vsub.f32 %v52, %v1044
    %v1046 = vand.u32 %v1045, 4294901760
    %1047 = vmatpush1.msra.mxu0 %v1046
    %v1048 = vand.u32 %v55, 4294901760
    %v1049 = vsub.f32 %v55, %v1048
    %v1050 = vand.u32 %v1049, 4294901760
    %1051 = vmatprep.subr.mxu0 %v1050
    %v1052 = vand.u32 %v54, 4294901760
    %v1053 = vsub.f32 %v54, %v1052
    %v1054 = vand.u32 %v1053, 4294901760
    %1055 = vmatpush1.msra.mxu0 %v1054
    %v1056 = vand.u32 %v57, 4294901760
    %v1057 = vsub.f32 %v57, %v1056
    %v1058 = vand.u32 %v1057, 4294901760
    %1059 = vmatprep.subr.mxu0 %v1058
    %v1060 = vand.u32 %v56, 4294901760
    %v1061 = vsub.f32 %v56, %v1060
    %v1062 = vand.u32 %v1061, 4294901760
    %1063 = vmatpush1.msra.mxu0 %v1062
    %v1064 = vand.u32 %v59, 4294901760
    %v1065 = vsub.f32 %v59, %v1064
    %v1066 = vand.u32 %v1065, 4294901760
    %1067 = vmatprep.subr.mxu0 %v1066
    %v1068 = vand.u32 %v58, 4294901760
    %v1069 = vsub.f32 %v58, %v1068
    %v1070 = vand.u32 %v1069, 4294901760
    %1071 = vmatpush1.msra.mxu0 %v1070
    %v1072 = vand.u32 %v61, 4294901760
    %v1073 = vsub.f32 %v61, %v1072
    %v1074 = vand.u32 %v1073, 4294901760
    %1075 = vmatprep.subr.mxu0 %v1074
    %v1076 = vand.u32 %v60, 4294901760
    %v1077 = vsub.f32 %v60, %v1076
    %v1078 = vand.u32 %v1077, 4294901760
    %1079 = vmatpush1.msra.mxu0 %v1078
    %v1080 = vand.u32 %v63, 4294901760
    %v1081 = vsub.f32 %v63, %v1080
    %v1082 = vand.u32 %v1081, 4294901760
    %1083 = vmatprep.subr.mxu0 %v1082
    %v1084 = vand.u32 %v62, 4294901760
    %v1085 = vsub.f32 %v62, %v1084
    %v1086 = vand.u32 %v1085, 4294901760
    %1087 = vmatpush1.msra.mxu0 %v1086
    %v1088 = vand.u32 %v65, 4294901760
    %v1089 = vsub.f32 %v65, %v1088
    %v1090 = vand.u32 %v1089, 4294901760
    %1091 = vmatprep.subr.mxu0 %v1090
    %v1092 = vand.u32 %v64, 4294901760
    %v1093 = vsub.f32 %v64, %v1092
    %v1094 = vand.u32 %v1093, 4294901760
    %1095 = vmatpush1.msra.mxu0 %v1094
    %v1096 = vand.u32 %v67, 4294901760
    %v1097 = vsub.f32 %v67, %v1096
    %v1098 = vand.u32 %v1097, 4294901760
    %1099 = vmatprep.subr.mxu0 %v1098
    %v1100 = vand.u32 %v66, 4294901760
    %v1101 = vsub.f32 %v66, %v1100
    %v1102 = vand.u32 %v1101, 4294901760
    %1103 = vmatpush1.msra.mxu0 %v1102
    %v1104 = vand.u32 %v69, 4294901760
    %v1105 = vsub.f32 %v69, %v1104
    %v1106 = vand.u32 %v1105, 4294901760
    %1107 = vmatprep.subr.mxu0 %v1106
    %v1108 = vand.u32 %v68, 4294901760
    %v1109 = vsub.f32 %v68, %v1108
    %v1110 = vand.u32 %v1109, 4294901760
    %1111 = vmatpush1.msra.mxu0 %v1110
    %v1112 = vand.u32 %v71, 4294901760
    %v1113 = vsub.f32 %v71, %v1112
    %v1114 = vand.u32 %v1113, 4294901760
    %1115 = vmatprep.subr.mxu0 %v1114
    %v1116 = vand.u32 %v70, 4294901760
    %v1117 = vsub.f32 %v70, %v1116
    %v1118 = vand.u32 %v1117, 4294901760
    %1119 = vmatpush1.msra.mxu0 %v1118
    %v1120 = vand.u32 %v73, 4294901760
    %v1121 = vsub.f32 %v73, %v1120
    %v1122 = vand.u32 %v1121, 4294901760
    %1123 = vmatprep.subr.mxu0 %v1122
    %v1124 = vand.u32 %v72, 4294901760
    %v1125 = vsub.f32 %v72, %v1124
    %v1126 = vand.u32 %v1125, 4294901760
    %1127 = vmatpush1.msra.mxu0 %v1126
    %v1128 = vand.u32 %v75, 4294901760
    %v1129 = vsub.f32 %v75, %v1128
    %v1130 = vand.u32 %v1129, 4294901760
    %1131 = vmatprep.subr.mxu0 %v1130
    %v1132 = vand.u32 %v74, 4294901760
    %v1133 = vsub.f32 %v74, %v1132
    %v1134 = vand.u32 %v1133, 4294901760
    %1135 = vmatpush1.msra.mxu0 %v1134
    %v1136 = vand.u32 %v77, 4294901760
    %v1137 = vsub.f32 %v77, %v1136
    %v1138 = vand.u32 %v1137, 4294901760
    %1139 = vmatprep.subr.mxu0 %v1138
    %v1140 = vand.u32 %v76, 4294901760
    %v1141 = vsub.f32 %v76, %v1140
    %v1142 = vand.u32 %v1141, 4294901760
    %1143 = vmatpush1.msra.mxu0 %v1142
    %v1144 = vand.u32 %v79, 4294901760
    %v1145 = vsub.f32 %v79, %v1144
    %v1146 = vand.u32 %v1145, 4294901760
    %1147 = vmatprep.subr.mxu0 %v1146
    %v1148 = vand.u32 %v78, 4294901760
    %v1149 = vsub.f32 %v78, %v1148
    %v1150 = vand.u32 %v1149, 4294901760
    %1151 = vmatpush1.msra.mxu0 %v1150
    %v1152 = vand.u32 %v81, 4294901760
    %v1153 = vsub.f32 %v81, %v1152
    %v1154 = vand.u32 %v1153, 4294901760
    %1155 = vmatprep.subr.mxu0 %v1154
    %v1156 = vand.u32 %v80, 4294901760
    %v1157 = vsub.f32 %v80, %v1156
    %v1158 = vand.u32 %v1157, 4294901760
    %1159 = vmatpush1.msra.mxu0 %v1158
    %v1160 = vand.u32 %v83, 4294901760
    %v1161 = vsub.f32 %v83, %v1160
    %v1162 = vand.u32 %v1161, 4294901760
    %1163 = vmatprep.subr.mxu0 %v1162
    %v1164 = vand.u32 %v82, 4294901760
    %v1165 = vsub.f32 %v82, %v1164
    %v1166 = vand.u32 %v1165, 4294901760
    %1167 = vmatpush1.msra.mxu0 %v1166
    %v1168 = vand.u32 %v85, 4294901760
    %v1169 = vsub.f32 %v85, %v1168
    %v1170 = vand.u32 %v1169, 4294901760
    %1171 = vmatprep.subr.mxu0 %v1170
    %v1172 = vand.u32 %v84, 4294901760
    %v1173 = vsub.f32 %v84, %v1172
    %v1174 = vand.u32 %v1173, 4294901760
    %1175 = vmatpush1.msra.mxu0 %v1174
    %v1176 = vand.u32 %v87, 4294901760
    %v1177 = vsub.f32 %v87, %v1176
    %v1178 = vand.u32 %v1177, 4294901760
    %1179 = vmatprep.subr.mxu0 %v1178
    %v1180 = vand.u32 %v86, 4294901760
    %v1181 = vsub.f32 %v86, %v1180
    %v1182 = vand.u32 %v1181, 4294901760
    %1183 = vmatpush1.msra.mxu0 %v1182
    %v1184 = vand.u32 %v89, 4294901760
    %v1185 = vsub.f32 %v89, %v1184
    %v1186 = vand.u32 %v1185, 4294901760
    %1187 = vmatprep.subr.mxu0 %v1186
    %v1188 = vand.u32 %v88, 4294901760
    %v1189 = vsub.f32 %v88, %v1188
    %v1190 = vand.u32 %v1189, 4294901760
    %1191 = vmatpush1.msra.mxu0 %v1190
    %v1192 = vand.u32 %v91, 4294901760
    %v1193 = vsub.f32 %v91, %v1192
    %v1194 = vand.u32 %v1193, 4294901760
    %1195 = vmatprep.subr.mxu0 %v1194
    %v1196 = vand.u32 %v90, 4294901760
    %v1197 = vsub.f32 %v90, %v1196
    %v1198 = vand.u32 %v1197, 4294901760
    %1199 = vmatpush1.msra.mxu0 %v1198
    %v1200 = vand.u32 %v93, 4294901760
    %v1201 = vsub.f32 %v93, %v1200
    %v1202 = vand.u32 %v1201, 4294901760
    %1203 = vmatprep.subr.mxu0 %v1202
    %v1204 = vand.u32 %v92, 4294901760
    %v1205 = vsub.f32 %v92, %v1204
    %v1206 = vand.u32 %v1205, 4294901760
    %1207 = vmatpush1.msra.mxu0 %v1206
    %v1208 = vand.u32 %v95, 4294901760
    %v1209 = vsub.f32 %v95, %v1208
    %v1210 = vand.u32 %v1209, 4294901760
    %1211 = vmatprep.subr.mxu0 %v1210
    %v1212 = vand.u32 %v94, 4294901760
    %v1213 = vsub.f32 %v94, %v1212
    %v1214 = vand.u32 %v1213, 4294901760
    %1215 = vmatpush1.msra.mxu0 %v1214
    %v1216 = vand.u32 %v97, 4294901760
    %v1217 = vsub.f32 %v97, %v1216
    %v1218 = vand.u32 %v1217, 4294901760
    %1219 = vmatprep.subr.mxu0 %v1218
    %v1220 = vand.u32 %v96, 4294901760
    %v1221 = vsub.f32 %v96, %v1220
    %v1222 = vand.u32 %v1221, 4294901760
    %1223 = vmatpush1.msra.mxu0 %v1222
    %v1224 = vand.u32 %v99, 4294901760
    %v1225 = vsub.f32 %v99, %v1224
    %v1226 = vand.u32 %v1225, 4294901760
    %1227 = vmatprep.subr.mxu0 %v1226
    %v1228 = vand.u32 %v98, 4294901760
    %v1229 = vsub.f32 %v98, %v1228
    %v1230 = vand.u32 %v1229, 4294901760
    %1231 = vmatpush1.msra.mxu0 %v1230
    %v1232 = vand.u32 %v101, 4294901760
    %v1233 = vsub.f32 %v101, %v1232
    %v1234 = vand.u32 %v1233, 4294901760
    %1235 = vmatprep.subr.mxu0 %v1234
    %v1236 = vand.u32 %v100, 4294901760
    %v1237 = vsub.f32 %v100, %v1236
    %v1238 = vand.u32 %v1237, 4294901760
    %1239 = vmatpush1.msra.mxu0 %v1238
    %v1240 = vand.u32 %v37, 4294901760
    %1241 = vmatprep.mubr.f32.mxu0 %v1240
    %v1242 = vand.u32 %v36, 4294901760
    %1243 = vmatmul.mubr.f32.gmra.mrb[0].mxu0 %v1242
    %v1244 = vpop.f32.mrb[0].mxu0
    %v1245 = vadd.f32 %v980, %v1244
    %v1246 = vpop.f32.mrb[0].mxu0
    %v1247 = vadd.f32 %v982, %v1246
    %1248 = vdwg.mxu0
    %v1249 = vand.u32 %v39, 4294901760
    %1250 = vmatprep.subr.mxu0 %v1249
    %v1251 = vand.u32 %v38, 4294901760
    %1252 = vmatpush1.msra.mxu0 %v1251
    %v1253 = vand.u32 %v41, 4294901760
    %1254 = vmatprep.subr.mxu0 %v1253
    %v1255 = vand.u32 %v40, 4294901760
    %1256 = vmatpush1.msra.mxu0 %v1255
    %v1257 = vand.u32 %v43, 4294901760
    %1258 = vmatprep.subr.mxu0 %v1257
    %v1259 = vand.u32 %v42, 4294901760
    %1260 = vmatpush1.msra.mxu0 %v1259
    %v1261 = vand.u32 %v45, 4294901760
    %1262 = vmatprep.subr.mxu0 %v1261
    %v1263 = vand.u32 %v44, 4294901760
    %1264 = vmatpush1.msra.mxu0 %v1263
    %v1265 = vand.u32 %v47, 4294901760
    %1266 = vmatprep.subr.mxu0 %v1265
    %v1267 = vand.u32 %v46, 4294901760
    %1268 = vmatpush1.msra.mxu0 %v1267
    %v1269 = vand.u32 %v49, 4294901760
    %1270 = vmatprep.subr.mxu0 %v1269
    %v1271 = vand.u32 %v48, 4294901760
    %1272 = vmatpush1.msra.mxu0 %v1271
    %v1273 = vand.u32 %v51, 4294901760
    %1274 = vmatprep.subr.mxu0 %v1273
    %v1275 = vand.u32 %v50, 4294901760
    %1276 = vmatpush1.msra.mxu0 %v1275
    %v1277 = vand.u32 %v53, 4294901760
    %1278 = vmatprep.subr.mxu0 %v1277
    %v1279 = vand.u32 %v52, 4294901760
    %1280 = vmatpush1.msra.mxu0 %v1279
    %v1281 = vand.u32 %v55, 4294901760
    %1282 = vmatprep.subr.mxu0 %v1281
    %v1283 = vand.u32 %v54, 4294901760
    %1284 = vmatpush1.msra.mxu0 %v1283
    %v1285 = vand.u32 %v57, 4294901760
    %1286 = vmatprep.subr.mxu0 %v1285
    %v1287 = vand.u32 %v56, 4294901760
    %1288 = vmatpush1.msra.mxu0 %v1287
    %v1289 = vand.u32 %v59, 4294901760
    %1290 = vmatprep.subr.mxu0 %v1289
    %v1291 = vand.u32 %v58, 4294901760
    %1292 = vmatpush1.msra.mxu0 %v1291
    %v1293 = vand.u32 %v61, 4294901760
    %1294 = vmatprep.subr.mxu0 %v1293
    %v1295 = vand.u32 %v60, 4294901760
    %1296 = vmatpush1.msra.mxu0 %v1295
    %v1297 = vand.u32 %v63, 4294901760
    %1298 = vmatprep.subr.mxu0 %v1297
    %v1299 = vand.u32 %v62, 4294901760
    %1300 = vmatpush1.msra.mxu0 %v1299
    %v1301 = vand.u32 %v65, 4294901760
    %1302 = vmatprep.subr.mxu0 %v1301
    %v1303 = vand.u32 %v64, 4294901760
    %1304 = vmatpush1.msra.mxu0 %v1303
    %v1305 = vand.u32 %v67, 4294901760
    %1306 = vmatprep.subr.mxu0 %v1305
    %v1307 = vand.u32 %v66, 4294901760
    %1308 = vmatpush1.msra.mxu0 %v1307
    %v1309 = vand.u32 %v69, 4294901760
    %1310 = vmatprep.subr.mxu0 %v1309
    %v1311 = vand.u32 %v68, 4294901760
    %1312 = vmatpush1.msra.mxu0 %v1311
    %v1313 = vand.u32 %v71, 4294901760
    %1314 = vmatprep.subr.mxu0 %v1313
    %v1315 = vand.u32 %v70, 4294901760
    %1316 = vmatpush1.msra.mxu0 %v1315
    %v1317 = vand.u32 %v73, 4294901760
    %1318 = vmatprep.subr.mxu0 %v1317
    %v1319 = vand.u32 %v72, 4294901760
    %1320 = vmatpush1.msra.mxu0 %v1319
    %v1321 = vand.u32 %v75, 4294901760
    %1322 = vmatprep.subr.mxu0 %v1321
    %v1323 = vand.u32 %v74, 4294901760
    %1324 = vmatpush1.msra.mxu0 %v1323
    %v1325 = vand.u32 %v77, 4294901760
    %1326 = vmatprep.subr.mxu0 %v1325
    %v1327 = vand.u32 %v76, 4294901760
    %1328 = vmatpush1.msra.mxu0 %v1327
    %v1329 = vand.u32 %v79, 4294901760
    %1330 = vmatprep.subr.mxu0 %v1329
    %v1331 = vand.u32 %v78, 4294901760
    %1332 = vmatpush1.msra.mxu0 %v1331
    %v1333 = vand.u32 %v81, 4294901760
    %1334 = vmatprep.subr.mxu0 %v1333
    %v1335 = vand.u32 %v80, 4294901760
    %1336 = vmatpush1.msra.mxu0 %v1335
    %v1337 = vand.u32 %v83, 4294901760
    %1338 = vmatprep.subr.mxu0 %v1337
    %v1339 = vand.u32 %v82, 4294901760
    %1340 = vmatpush1.msra.mxu0 %v1339
    %v1341 = vand.u32 %v85, 4294901760
    %1342 = vmatprep.subr.mxu0 %v1341
    %v1343 = vand.u32 %v84, 4294901760
    %1344 = vmatpush1.msra.mxu0 %v1343
    %v1345 = vand.u32 %v87, 4294901760
    %1346 = vmatprep.subr.mxu0 %v1345
    %v1347 = vand.u32 %v86, 4294901760
    %1348 = vmatpush1.msra.mxu0 %v1347
    %v1349 = vand.u32 %v89, 4294901760
    %1350 = vmatprep.subr.mxu0 %v1349
    %v1351 = vand.u32 %v88, 4294901760
    %1352 = vmatpush1.msra.mxu0 %v1351
    %v1353 = vand.u32 %v91, 4294901760
    %1354 = vmatprep.subr.mxu0 %v1353
    %v1355 = vand.u32 %v90, 4294901760
    %1356 = vmatpush1.msra.mxu0 %v1355
    %v1357 = vand.u32 %v93, 4294901760
    %1358 = vmatprep.subr.mxu0 %v1357
    %v1359 = vand.u32 %v92, 4294901760
    %1360 = vmatpush1.msra.mxu0 %v1359
    %v1361 = vand.u32 %v95, 4294901760
    %1362 = vmatprep.subr.mxu0 %v1361
    %v1363 = vand.u32 %v94, 4294901760
    %1364 = vmatpush1.msra.mxu0 %v1363
    %v1365 = vand.u32 %v97, 4294901760
    %1366 = vmatprep.subr.mxu0 %v1365
    %v1367 = vand.u32 %v96, 4294901760
    %1368 = vmatpush1.msra.mxu0 %v1367
    %v1369 = vand.u32 %v99, 4294901760
    %1370 = vmatprep.subr.mxu0 %v1369
    %v1371 = vand.u32 %v98, 4294901760
    %1372 = vmatpush1.msra.mxu0 %v1371
    %v1373 = vand.u32 %v101, 4294901760
    %1374 = vmatprep.subr.mxu0 %v1373
    %v1375 = vand.u32 %v100, 4294901760
    %1376 = vmatpush1.msra.mxu0 %v1375
    %v1377 = vand.u32 %v37, 4294901760
    %1378 = vmatprep.mubr.f32.mxu0 %v1377
    %v1379 = vand.u32 %v36, 4294901760
    %1380 = vmatmul.mubr.f32.gmra.mrb[0].mxu0 %v1379
    %v1381 = vpop.f32.mrb[0].mxu0
    %v1382 = vadd.f32 %v1245, %v1381
    %v1383 = vpop.f32.mrb[0].mxu0
    %v1384 = vadd.f32 %v1247, %v1383
    %1385 = vdwg.mxu0
    %s1386 = sld [smem:[#allocation2 + $0x5]]
    %s1387 = sld [smem:[#allocation2 + $0x6]]
    %s1388 = sld [smem:[#allocation2 + $0x7]]
    %s1389 = sld [smem:[#allocation2 + $0x8]]
    %s1390 = sld [smem:[#allocation2 + $0x9]]
    %s1391 = sld [smem:[#allocation2 + $0xb]]
    %v1392 = vld [vmem:[%s2] sm:$0xff]
    %v1393 = vld [vmem:[%s2 + $0x8] sm:$0xff]
    %vm1394 = vcmp.ge.f32.partialorder %v1392, 0.02
    %vm1395 = vcmp.ge.f32.partialorder %v1393, 0.02
    %v1396 = vsel %vm1394, 1.0, 0.0
    %v1397 = vsel %vm1395, 1.0, 0.0
    %v1398 = vmul.f32 %v1382, %v1396
    %v1399 = vmul.f32 %v1384, %v1397
    %v1400 = vmul.f32 %v1398, 1.0204082
    %v1401 = vmul.f32 %v1399, 1.0204082
    %v1402 = vstv %s1386
    %v1403 = vmul.f32 %v1402, %v1400
    %v1404 = vmul.f32 %v1402, %v1401
    %s1405 = ssub.f32 1.0, %s1386
    %v1406 = vstv %s1405
    %v1407 = vmul.f32 %v1406, %v1382
    %v1408 = vmul.f32 %v1406, %v1384
    %v1409 = vadd.f32 %v1403, %v1407
    %v1410 = vadd.f32 %v1404, %v1408
    %s1411 = ssub.f32 1.0, %s1387
    %v1412 = vstv %s1411
    %v1413 = vmul.f32 %v1412, %v1409
    %v1414 = vmul.f32 %v1412, %v1410
    %v1415 = vmax.f32 %v1413, 0.0
    %v1416 = vmax.f32 %v1414, 0.0
    %v1417 = vmin.f32 %v1415, 1.0
    %v1418 = vmin.f32 %v1416, 1.0
    %v1419 = vmul.f32 %v1417, 255.0
    %v1420 = vmul.f32 %v1418, 255.0
    %v1421 = vfloor.f32 %v1419
    %v1422 = vfloor.f32 %v1420
    %v1423 = vmul.f32 %v1421, 0.015625
    %v1424 = vmul.f32 %v1422, 0.015625
    %v1425 = vfloor.f32 %v1423
    %v1426 = vfloor.f32 %v1424
    %v1427 = vmul.f32 %v1425, 64.0
    %v1428 = vmul.f32 %v1426, 64.0
    %v1429 = vmul.f32 %v1427, 0.003921569
    %v1430 = vmul.f32 %v1428, 0.003921569
    %v1431 = vstv %s1388
    %v1432 = vmul.f32 %v1431, %v1429
    %v1433 = vmul.f32 %v1431, %v1430
    %s1434 = ssub.f32 1.0, %s1388
    %v1435 = vstv %s1434
    %v1436 = vmul.f32 %v1435, %v1413
    %v1437 = vmul.f32 %v1435, %v1414
    %v1438 = vadd.f32 %v1432, %v1436
    %v1439 = vadd.f32 %v1433, %v1437
    %v1440 = vld [vmem:[%s4] sm:$0xff]
    %v1441 = vld [vmem:[%s4 + $0x8] sm:$0xff]
    %v1442 = vld [vmem:[%s4 + $0x10] sm:$0xff]
    %v1443 = vld [vmem:[%s4 + $0x18] sm:$0xff]
    %v1444 = vld [vmem:[%s4 + $0x20] sm:$0xff]
    %v1445 = vld [vmem:[%s4 + $0x28] sm:$0xff]
    %v1446 = vld [vmem:[%s4 + $0x30] sm:$0xff]
    %v1447 = vld [vmem:[%s4 + $0x38] sm:$0xff]
    %v1448 = vld [vmem:[%s4 + $0x40] sm:$0xff]
    %v1449 = vld [vmem:[%s4 + $0x48] sm:$0xff]
    %v1450 = vld [vmem:[%s4 + $0x50] sm:$0xff]
    %v1451 = vld [vmem:[%s4 + $0x58] sm:$0xff]
    %v1452 = vld [vmem:[%s4 + $0x60] sm:$0xff]
    %v1453 = vld [vmem:[%s4 + $0x68] sm:$0xff]
    %v1454 = vld [vmem:[%s4 + $0x70] sm:$0xff]
    %v1455 = vld [vmem:[%s4 + $0x78] sm:$0xff]
    %v1456 = vld [vmem:[%s4 + $0x80] sm:$0xff]
    %v1457 = vld [vmem:[%s4 + $0x88] sm:$0xff]
    %v1458 = vld [vmem:[%s4 + $0x90] sm:$0xff]
    %v1459 = vld [vmem:[%s4 + $0x98] sm:$0xff]
    %v1460 = vld [vmem:[%s4 + $0xa0] sm:$0xff]
    %v1461 = vld [vmem:[%s4 + $0xa8] sm:$0xff]
    %v1462 = vld [vmem:[%s4 + $0xb0] sm:$0xff]
    %v1463 = vld [vmem:[%s4 + $0xb8] sm:$0xff]
    %v1464 = vld [vmem:[%s4 + $0xc0] sm:$0xff]
    %v1465 = vld [vmem:[%s4 + $0xc8] sm:$0xff]
    %v1466 = vld [vmem:[%s4 + $0xd0] sm:$0xff]
    %v1467 = vld [vmem:[%s4 + $0xd8] sm:$0xff]
    %v1468 = vld [vmem:[%s4 + $0xe0] sm:$0xff]
    %v1469 = vld [vmem:[%s4 + $0xe8] sm:$0xff]
    %v1470 = vld [vmem:[%s4 + $0xf0] sm:$0xff]
    %v1471 = vld [vmem:[%s4 + $0xf8] sm:$0xff]
    %v1472 = vld [vmem:[%s4 + $0x100] sm:$0xff]
    %v1473 = vld [vmem:[%s4 + $0x108] sm:$0xff]
    %v1474 = vld [vmem:[%s4 + $0x110] sm:$0xff]
    %v1475 = vld [vmem:[%s4 + $0x118] sm:$0xff]
    %v1476 = vld [vmem:[%s4 + $0x120] sm:$0xff]
    %v1477 = vld [vmem:[%s4 + $0x128] sm:$0xff]
    %v1478 = vld [vmem:[%s4 + $0x130] sm:$0xff]
    %v1479 = vld [vmem:[%s4 + $0x138] sm:$0xff]
    %v1480 = vld [vmem:[%s4 + $0x140] sm:$0xff]
    %v1481 = vld [vmem:[%s4 + $0x148] sm:$0xff]
    %v1482 = vld [vmem:[%s4 + $0x150] sm:$0xff]
    %v1483 = vld [vmem:[%s4 + $0x158] sm:$0xff]
    %v1484 = vld [vmem:[%s4 + $0x160] sm:$0xff]
    %v1485 = vld [vmem:[%s4 + $0x168] sm:$0xff]
    %v1486 = vld [vmem:[%s4 + $0x170] sm:$0xff]
    %v1487 = vld [vmem:[%s4 + $0x178] sm:$0xff]
    %v1488 = vld [vmem:[%s4 + $0x180] sm:$0xff]
    %v1489 = vld [vmem:[%s4 + $0x188] sm:$0xff]
    %v1490 = vld [vmem:[%s4 + $0x190] sm:$0xff]
    %v1491 = vld [vmem:[%s4 + $0x198] sm:$0xff]
    %v1492 = vld [vmem:[%s4 + $0x1a0] sm:$0xff]
    %v1493 = vld [vmem:[%s4 + $0x1a8] sm:$0xff]
    %v1494 = vld [vmem:[%s4 + $0x1b0] sm:$0xff]
    %v1495 = vld [vmem:[%s4 + $0x1b8] sm:$0xff]
    %v1496 = vld [vmem:[%s4 + $0x1c0] sm:$0xff]
    %v1497 = vld [vmem:[%s4 + $0x1c8] sm:$0xff]
    %v1498 = vld [vmem:[%s4 + $0x1d0] sm:$0xff]
    %v1499 = vld [vmem:[%s4 + $0x1d8] sm:$0xff]
    %v1500 = vld [vmem:[%s4 + $0x1e0] sm:$0xff]
    %v1501 = vld [vmem:[%s4 + $0x1e8] sm:$0xff]
    %v1502 = vld [vmem:[%s4 + $0x1f0] sm:$0xff]
    %v1503 = vld [vmem:[%s4 + $0x1f8] sm:$0xff]
    %v1504 = vand.u32 %v1441, 4294901760
    %1505 = vmatprep.subr.mxu0 %v1504
    %v1506 = vand.u32 %v1440, 4294901760
    %1507 = vmatpush1.msra.mxu0 %v1506
    %v1508 = vand.u32 %v1443, 4294901760
    %1509 = vmatprep.subr.mxu0 %v1508
    %v1510 = vand.u32 %v1442, 4294901760
    %1511 = vmatpush1.msra.mxu0 %v1510
    %v1512 = vand.u32 %v1445, 4294901760
    %1513 = vmatprep.subr.mxu0 %v1512
    %v1514 = vand.u32 %v1444, 4294901760
    %1515 = vmatpush1.msra.mxu0 %v1514
    %v1516 = vand.u32 %v1447, 4294901760
    %1517 = vmatprep.subr.mxu0 %v1516
    %v1518 = vand.u32 %v1446, 4294901760
    %1519 = vmatpush1.msra.mxu0 %v1518
    %v1520 = vand.u32 %v1449, 4294901760
    %1521 = vmatprep.subr.mxu0 %v1520
    %v1522 = vand.u32 %v1448, 4294901760
    %1523 = vmatpush1.msra.mxu0 %v1522
    %v1524 = vand.u32 %v1451, 4294901760
    %1525 = vmatprep.subr.mxu0 %v1524
    %v1526 = vand.u32 %v1450, 4294901760
    %1527 = vmatpush1.msra.mxu0 %v1526
    %v1528 = vand.u32 %v1453, 4294901760
    %1529 = vmatprep.subr.mxu0 %v1528
    %v1530 = vand.u32 %v1452, 4294901760
    %1531 = vmatpush1.msra.mxu0 %v1530
    %v1532 = vand.u32 %v1455, 4294901760
    %1533 = vmatprep.subr.mxu0 %v1532
    %v1534 = vand.u32 %v1454, 4294901760
    %1535 = vmatpush1.msra.mxu0 %v1534
    %v1536 = vand.u32 %v1457, 4294901760
    %1537 = vmatprep.subr.mxu0 %v1536
    %v1538 = vand.u32 %v1456, 4294901760
    %1539 = vmatpush1.msra.mxu0 %v1538
    %v1540 = vand.u32 %v1459, 4294901760
    %1541 = vmatprep.subr.mxu0 %v1540
    %v1542 = vand.u32 %v1458, 4294901760
    %1543 = vmatpush1.msra.mxu0 %v1542
    %v1544 = vand.u32 %v1461, 4294901760
    %1545 = vmatprep.subr.mxu0 %v1544
    %v1546 = vand.u32 %v1460, 4294901760
    %1547 = vmatpush1.msra.mxu0 %v1546
    %v1548 = vand.u32 %v1463, 4294901760
    %1549 = vmatprep.subr.mxu0 %v1548
    %v1550 = vand.u32 %v1462, 4294901760
    %1551 = vmatpush1.msra.mxu0 %v1550
    %v1552 = vand.u32 %v1465, 4294901760
    %1553 = vmatprep.subr.mxu0 %v1552
    %v1554 = vand.u32 %v1464, 4294901760
    %1555 = vmatpush1.msra.mxu0 %v1554
    %v1556 = vand.u32 %v1467, 4294901760
    %1557 = vmatprep.subr.mxu0 %v1556
    %v1558 = vand.u32 %v1466, 4294901760
    %1559 = vmatpush1.msra.mxu0 %v1558
    %v1560 = vand.u32 %v1469, 4294901760
    %1561 = vmatprep.subr.mxu0 %v1560
    %v1562 = vand.u32 %v1468, 4294901760
    %1563 = vmatpush1.msra.mxu0 %v1562
    %v1564 = vand.u32 %v1471, 4294901760
    %1565 = vmatprep.subr.mxu0 %v1564
    %v1566 = vand.u32 %v1470, 4294901760
    %1567 = vmatpush1.msra.mxu0 %v1566
    %v1568 = vand.u32 %v1473, 4294901760
    %1569 = vmatprep.subr.mxu0 %v1568
    %v1570 = vand.u32 %v1472, 4294901760
    %1571 = vmatpush1.msra.mxu0 %v1570
    %v1572 = vand.u32 %v1475, 4294901760
    %1573 = vmatprep.subr.mxu0 %v1572
    %v1574 = vand.u32 %v1474, 4294901760
    %1575 = vmatpush1.msra.mxu0 %v1574
    %v1576 = vand.u32 %v1477, 4294901760
    %1577 = vmatprep.subr.mxu0 %v1576
    %v1578 = vand.u32 %v1476, 4294901760
    %1579 = vmatpush1.msra.mxu0 %v1578
    %v1580 = vand.u32 %v1479, 4294901760
    %1581 = vmatprep.subr.mxu0 %v1580
    %v1582 = vand.u32 %v1478, 4294901760
    %1583 = vmatpush1.msra.mxu0 %v1582
    %v1584 = vand.u32 %v1481, 4294901760
    %1585 = vmatprep.subr.mxu0 %v1584
    %v1586 = vand.u32 %v1480, 4294901760
    %1587 = vmatpush1.msra.mxu0 %v1586
    %v1588 = vand.u32 %v1483, 4294901760
    %1589 = vmatprep.subr.mxu0 %v1588
    %v1590 = vand.u32 %v1482, 4294901760
    %1591 = vmatpush1.msra.mxu0 %v1590
    %v1592 = vand.u32 %v1485, 4294901760
    %1593 = vmatprep.subr.mxu0 %v1592
    %v1594 = vand.u32 %v1484, 4294901760
    %1595 = vmatpush1.msra.mxu0 %v1594
    %v1596 = vand.u32 %v1487, 4294901760
    %1597 = vmatprep.subr.mxu0 %v1596
    %v1598 = vand.u32 %v1486, 4294901760
    %1599 = vmatpush1.msra.mxu0 %v1598
    %v1600 = vand.u32 %v1489, 4294901760
    %1601 = vmatprep.subr.mxu0 %v1600
    %v1602 = vand.u32 %v1488, 4294901760
    %1603 = vmatpush1.msra.mxu0 %v1602
    %v1604 = vand.u32 %v1491, 4294901760
    %1605 = vmatprep.subr.mxu0 %v1604
    %v1606 = vand.u32 %v1490, 4294901760
    %1607 = vmatpush1.msra.mxu0 %v1606
    %v1608 = vand.u32 %v1493, 4294901760
    %1609 = vmatprep.subr.mxu0 %v1608
    %v1610 = vand.u32 %v1492, 4294901760
    %1611 = vmatpush1.msra.mxu0 %v1610
    %v1612 = vand.u32 %v1495, 4294901760
    %1613 = vmatprep.subr.mxu0 %v1612
    %v1614 = vand.u32 %v1494, 4294901760
    %1615 = vmatpush1.msra.mxu0 %v1614
    %v1616 = vand.u32 %v1497, 4294901760
    %1617 = vmatprep.subr.mxu0 %v1616
    %v1618 = vand.u32 %v1496, 4294901760
    %1619 = vmatpush1.msra.mxu0 %v1618
    %v1620 = vand.u32 %v1499, 4294901760
    %1621 = vmatprep.subr.mxu0 %v1620
    %v1622 = vand.u32 %v1498, 4294901760
    %1623 = vmatpush1.msra.mxu0 %v1622
    %v1624 = vand.u32 %v1501, 4294901760
    %1625 = vmatprep.subr.mxu0 %v1624
    %v1626 = vand.u32 %v1500, 4294901760
    %1627 = vmatpush1.msra.mxu0 %v1626
    %v1628 = vand.u32 %v1503, 4294901760
    %1629 = vmatprep.subr.mxu0 %v1628
    %v1630 = vand.u32 %v1502, 4294901760
    %1631 = vmatpush1.msra.mxu0 %v1630
    %v1632 = vand.u32 %v1439, 4294901760
    %v1633 = vsub.f32 %v1439, %v1632
    %v1634 = vand.u32 %v1633, 4294901760
    %v1635 = vsub.f32 %v1633, %v1634
    %v1636 = vand.u32 %v1635, 4294901760
    %1637 = vmatprep.mubr.f32.mxu0 %v1636
    %v1638 = vand.u32 %v1438, 4294901760
    %v1639 = vsub.f32 %v1438, %v1638
    %v1640 = vand.u32 %v1639, 4294901760
    %v1641 = vsub.f32 %v1639, %v1640
    %v1642 = vand.u32 %v1641, 4294901760
    %1643 = vmatmul.mubr.f32.gmra.mrb[0].mxu0 %v1642
    %v1644 = vpop.f32.mrb[0].mxu0
    %v1645 = vadd.f32 0.0, %v1644
    %v1646 = vpop.f32.mrb[0].mxu0
    %v1647 = vadd.f32 0.0, %v1646
    %1648 = vdwg.mxu0
    %v1649 = vand.u32 %v1441, 4294901760
    %v1650 = vsub.f32 %v1441, %v1649
    %v1651 = vand.u32 %v1650, 4294901760
    %v1652 = vsub.f32 %v1650, %v1651
    %v1653 = vand.u32 %v1652, 4294901760
    %1654 = vmatprep.subr.mxu0 %v1653
    %v1655 = vand.u32 %v1440, 4294901760
    %v1656 = vsub.f32 %v1440, %v1655
    %v1657 = vand.u32 %v1656, 4294901760
    %v1658 = vsub.f32 %v1656, %v1657
    %v1659 = vand.u32 %v1658, 4294901760
    %1660 = vmatpush1.msra.mxu0 %v1659
    %v1661 = vand.u32 %v1443, 4294901760
    %v1662 = vsub.f32 %v1443, %v1661
    %v1663 = vand.u32 %v1662, 4294901760
    %v1664 = vsub.f32 %v1662, %v1663
    %v1665 = vand.u32 %v1664, 4294901760
    %1666 = vmatprep.subr.mxu0 %v1665
    %v1667 = vand.u32 %v1442, 4294901760
    %v1668 = vsub.f32 %v1442, %v1667
    %v1669 = vand.u32 %v1668, 4294901760
    %v1670 = vsub.f32 %v1668, %v1669
    %v1671 = vand.u32 %v1670, 4294901760
    %1672 = vmatpush1.msra.mxu0 %v1671
    %v1673 = vand.u32 %v1445, 4294901760
    %v1674 = vsub.f32 %v1445, %v1673
    %v1675 = vand.u32 %v1674, 4294901760
    %v1676 = vsub.f32 %v1674, %v1675
    %v1677 = vand.u32 %v1676, 4294901760
    %1678 = vmatprep.subr.mxu0 %v1677
    %v1679 = vand.u32 %v1444, 4294901760
    %v1680 = vsub.f32 %v1444, %v1679
    %v1681 = vand.u32 %v1680, 4294901760
    %v1682 = vsub.f32 %v1680, %v1681
    %v1683 = vand.u32 %v1682, 4294901760
    %1684 = vmatpush1.msra.mxu0 %v1683
    %v1685 = vand.u32 %v1447, 4294901760
    %v1686 = vsub.f32 %v1447, %v1685
    %v1687 = vand.u32 %v1686, 4294901760
    %v1688 = vsub.f32 %v1686, %v1687
    %v1689 = vand.u32 %v1688, 4294901760
    %1690 = vmatprep.subr.mxu0 %v1689
    %v1691 = vand.u32 %v1446, 4294901760
    %v1692 = vsub.f32 %v1446, %v1691
    %v1693 = vand.u32 %v1692, 4294901760
    %v1694 = vsub.f32 %v1692, %v1693
    %v1695 = vand.u32 %v1694, 4294901760
    %1696 = vmatpush1.msra.mxu0 %v1695
    %v1697 = vand.u32 %v1449, 4294901760
    %v1698 = vsub.f32 %v1449, %v1697
    %v1699 = vand.u32 %v1698, 4294901760
    %v1700 = vsub.f32 %v1698, %v1699
    %v1701 = vand.u32 %v1700, 4294901760
    %1702 = vmatprep.subr.mxu0 %v1701
    %v1703 = vand.u32 %v1448, 4294901760
    %v1704 = vsub.f32 %v1448, %v1703
    %v1705 = vand.u32 %v1704, 4294901760
    %v1706 = vsub.f32 %v1704, %v1705
    %v1707 = vand.u32 %v1706, 4294901760
    %1708 = vmatpush1.msra.mxu0 %v1707
    %v1709 = vand.u32 %v1451, 4294901760
    %v1710 = vsub.f32 %v1451, %v1709
    %v1711 = vand.u32 %v1710, 4294901760
    %v1712 = vsub.f32 %v1710, %v1711
    %v1713 = vand.u32 %v1712, 4294901760
    %1714 = vmatprep.subr.mxu0 %v1713
    %v1715 = vand.u32 %v1450, 4294901760
    %v1716 = vsub.f32 %v1450, %v1715
    %v1717 = vand.u32 %v1716, 4294901760
    %v1718 = vsub.f32 %v1716, %v1717
    %v1719 = vand.u32 %v1718, 4294901760
    %1720 = vmatpush1.msra.mxu0 %v1719
    %v1721 = vand.u32 %v1453, 4294901760
    %v1722 = vsub.f32 %v1453, %v1721
    %v1723 = vand.u32 %v1722, 4294901760
    %v1724 = vsub.f32 %v1722, %v1723
    %v1725 = vand.u32 %v1724, 4294901760
    %1726 = vmatprep.subr.mxu0 %v1725
    %v1727 = vand.u32 %v1452, 4294901760
    %v1728 = vsub.f32 %v1452, %v1727
    %v1729 = vand.u32 %v1728, 4294901760
    %v1730 = vsub.f32 %v1728, %v1729
    %v1731 = vand.u32 %v1730, 4294901760
    %1732 = vmatpush1.msra.mxu0 %v1731
    %v1733 = vand.u32 %v1455, 4294901760
    %v1734 = vsub.f32 %v1455, %v1733
    %v1735 = vand.u32 %v1734, 4294901760
    %v1736 = vsub.f32 %v1734, %v1735
    %v1737 = vand.u32 %v1736, 4294901760
    %1738 = vmatprep.subr.mxu0 %v1737
    %v1739 = vand.u32 %v1454, 4294901760
    %v1740 = vsub.f32 %v1454, %v1739
    %v1741 = vand.u32 %v1740, 4294901760
    %v1742 = vsub.f32 %v1740, %v1741
    %v1743 = vand.u32 %v1742, 4294901760
    %1744 = vmatpush1.msra.mxu0 %v1743
    %v1745 = vand.u32 %v1457, 4294901760
    %v1746 = vsub.f32 %v1457, %v1745
    %v1747 = vand.u32 %v1746, 4294901760
    %v1748 = vsub.f32 %v1746, %v1747
    %v1749 = vand.u32 %v1748, 4294901760
    %1750 = vmatprep.subr.mxu0 %v1749
    %v1751 = vand.u32 %v1456, 4294901760
    %v1752 = vsub.f32 %v1456, %v1751
    %v1753 = vand.u32 %v1752, 4294901760
    %v1754 = vsub.f32 %v1752, %v1753
    %v1755 = vand.u32 %v1754, 4294901760
    %1756 = vmatpush1.msra.mxu0 %v1755
    %v1757 = vand.u32 %v1459, 4294901760
    %v1758 = vsub.f32 %v1459, %v1757
    %v1759 = vand.u32 %v1758, 4294901760
    %v1760 = vsub.f32 %v1758, %v1759
    %v1761 = vand.u32 %v1760, 4294901760
    %1762 = vmatprep.subr.mxu0 %v1761
    %v1763 = vand.u32 %v1458, 4294901760
    %v1764 = vsub.f32 %v1458, %v1763
    %v1765 = vand.u32 %v1764, 4294901760
    %v1766 = vsub.f32 %v1764, %v1765
    %v1767 = vand.u32 %v1766, 4294901760
    %1768 = vmatpush1.msra.mxu0 %v1767
    %v1769 = vand.u32 %v1461, 4294901760
    %v1770 = vsub.f32 %v1461, %v1769
    %v1771 = vand.u32 %v1770, 4294901760
    %v1772 = vsub.f32 %v1770, %v1771
    %v1773 = vand.u32 %v1772, 4294901760
    %1774 = vmatprep.subr.mxu0 %v1773
    %v1775 = vand.u32 %v1460, 4294901760
    %v1776 = vsub.f32 %v1460, %v1775
    %v1777 = vand.u32 %v1776, 4294901760
    %v1778 = vsub.f32 %v1776, %v1777
    %v1779 = vand.u32 %v1778, 4294901760
    %1780 = vmatpush1.msra.mxu0 %v1779
    %v1781 = vand.u32 %v1463, 4294901760
    %v1782 = vsub.f32 %v1463, %v1781
    %v1783 = vand.u32 %v1782, 4294901760
    %v1784 = vsub.f32 %v1782, %v1783
    %v1785 = vand.u32 %v1784, 4294901760
    %1786 = vmatprep.subr.mxu0 %v1785
    %v1787 = vand.u32 %v1462, 4294901760
    %v1788 = vsub.f32 %v1462, %v1787
    %v1789 = vand.u32 %v1788, 4294901760
    %v1790 = vsub.f32 %v1788, %v1789
    %v1791 = vand.u32 %v1790, 4294901760
    %1792 = vmatpush1.msra.mxu0 %v1791
    %v1793 = vand.u32 %v1465, 4294901760
    %v1794 = vsub.f32 %v1465, %v1793
    %v1795 = vand.u32 %v1794, 4294901760
    %v1796 = vsub.f32 %v1794, %v1795
    %v1797 = vand.u32 %v1796, 4294901760
    %1798 = vmatprep.subr.mxu0 %v1797
    %v1799 = vand.u32 %v1464, 4294901760
    %v1800 = vsub.f32 %v1464, %v1799
    %v1801 = vand.u32 %v1800, 4294901760
    %v1802 = vsub.f32 %v1800, %v1801
    %v1803 = vand.u32 %v1802, 4294901760
    %1804 = vmatpush1.msra.mxu0 %v1803
    %v1805 = vand.u32 %v1467, 4294901760
    %v1806 = vsub.f32 %v1467, %v1805
    %v1807 = vand.u32 %v1806, 4294901760
    %v1808 = vsub.f32 %v1806, %v1807
    %v1809 = vand.u32 %v1808, 4294901760
    %1810 = vmatprep.subr.mxu0 %v1809
    %v1811 = vand.u32 %v1466, 4294901760
    %v1812 = vsub.f32 %v1466, %v1811
    %v1813 = vand.u32 %v1812, 4294901760
    %v1814 = vsub.f32 %v1812, %v1813
    %v1815 = vand.u32 %v1814, 4294901760
    %1816 = vmatpush1.msra.mxu0 %v1815
    %v1817 = vand.u32 %v1469, 4294901760
    %v1818 = vsub.f32 %v1469, %v1817
    %v1819 = vand.u32 %v1818, 4294901760
    %v1820 = vsub.f32 %v1818, %v1819
    %v1821 = vand.u32 %v1820, 4294901760
    %1822 = vmatprep.subr.mxu0 %v1821
    %v1823 = vand.u32 %v1468, 4294901760
    %v1824 = vsub.f32 %v1468, %v1823
    %v1825 = vand.u32 %v1824, 4294901760
    %v1826 = vsub.f32 %v1824, %v1825
    %v1827 = vand.u32 %v1826, 4294901760
    %1828 = vmatpush1.msra.mxu0 %v1827
    %v1829 = vand.u32 %v1471, 4294901760
    %v1830 = vsub.f32 %v1471, %v1829
    %v1831 = vand.u32 %v1830, 4294901760
    %v1832 = vsub.f32 %v1830, %v1831
    %v1833 = vand.u32 %v1832, 4294901760
    %1834 = vmatprep.subr.mxu0 %v1833
    %v1835 = vand.u32 %v1470, 4294901760
    %v1836 = vsub.f32 %v1470, %v1835
    %v1837 = vand.u32 %v1836, 4294901760
    %v1838 = vsub.f32 %v1836, %v1837
    %v1839 = vand.u32 %v1838, 4294901760
    %1840 = vmatpush1.msra.mxu0 %v1839
    %v1841 = vand.u32 %v1473, 4294901760
    %v1842 = vsub.f32 %v1473, %v1841
    %v1843 = vand.u32 %v1842, 4294901760
    %v1844 = vsub.f32 %v1842, %v1843
    %v1845 = vand.u32 %v1844, 4294901760
    %1846 = vmatprep.subr.mxu0 %v1845
    %v1847 = vand.u32 %v1472, 4294901760
    %v1848 = vsub.f32 %v1472, %v1847
    %v1849 = vand.u32 %v1848, 4294901760
    %v1850 = vsub.f32 %v1848, %v1849
    %v1851 = vand.u32 %v1850, 4294901760
    %1852 = vmatpush1.msra.mxu0 %v1851
    %v1853 = vand.u32 %v1475, 4294901760
    %v1854 = vsub.f32 %v1475, %v1853
    %v1855 = vand.u32 %v1854, 4294901760
    %v1856 = vsub.f32 %v1854, %v1855
    %v1857 = vand.u32 %v1856, 4294901760
    %1858 = vmatprep.subr.mxu0 %v1857
    %v1859 = vand.u32 %v1474, 4294901760
    %v1860 = vsub.f32 %v1474, %v1859
    %v1861 = vand.u32 %v1860, 4294901760
    %v1862 = vsub.f32 %v1860, %v1861
    %v1863 = vand.u32 %v1862, 4294901760
    %1864 = vmatpush1.msra.mxu0 %v1863
    %v1865 = vand.u32 %v1477, 4294901760
    %v1866 = vsub.f32 %v1477, %v1865
    %v1867 = vand.u32 %v1866, 4294901760
    %v1868 = vsub.f32 %v1866, %v1867
    %v1869 = vand.u32 %v1868, 4294901760
    %1870 = vmatprep.subr.mxu0 %v1869
    %v1871 = vand.u32 %v1476, 4294901760
    %v1872 = vsub.f32 %v1476, %v1871
    %v1873 = vand.u32 %v1872, 4294901760
    %v1874 = vsub.f32 %v1872, %v1873
    %v1875 = vand.u32 %v1874, 4294901760
    %1876 = vmatpush1.msra.mxu0 %v1875
    %v1877 = vand.u32 %v1479, 4294901760
    %v1878 = vsub.f32 %v1479, %v1877
    %v1879 = vand.u32 %v1878, 4294901760
    %v1880 = vsub.f32 %v1878, %v1879
    %v1881 = vand.u32 %v1880, 4294901760
    %1882 = vmatprep.subr.mxu0 %v1881
    %v1883 = vand.u32 %v1478, 4294901760
    %v1884 = vsub.f32 %v1478, %v1883
    %v1885 = vand.u32 %v1884, 4294901760
    %v1886 = vsub.f32 %v1884, %v1885
    %v1887 = vand.u32 %v1886, 4294901760
    %1888 = vmatpush1.msra.mxu0 %v1887
    %v1889 = vand.u32 %v1481, 4294901760
    %v1890 = vsub.f32 %v1481, %v1889
    %v1891 = vand.u32 %v1890, 4294901760
    %v1892 = vsub.f32 %v1890, %v1891
    %v1893 = vand.u32 %v1892, 4294901760
    %1894 = vmatprep.subr.mxu0 %v1893
    %v1895 = vand.u32 %v1480, 4294901760
    %v1896 = vsub.f32 %v1480, %v1895
    %v1897 = vand.u32 %v1896, 4294901760
    %v1898 = vsub.f32 %v1896, %v1897
    %v1899 = vand.u32 %v1898, 4294901760
    %1900 = vmatpush1.msra.mxu0 %v1899
    %v1901 = vand.u32 %v1483, 4294901760
    %v1902 = vsub.f32 %v1483, %v1901
    %v1903 = vand.u32 %v1902, 4294901760
    %v1904 = vsub.f32 %v1902, %v1903
    %v1905 = vand.u32 %v1904, 4294901760
    %1906 = vmatprep.subr.mxu0 %v1905
    %v1907 = vand.u32 %v1482, 4294901760
    %v1908 = vsub.f32 %v1482, %v1907
    %v1909 = vand.u32 %v1908, 4294901760
    %v1910 = vsub.f32 %v1908, %v1909
    %v1911 = vand.u32 %v1910, 4294901760
    %1912 = vmatpush1.msra.mxu0 %v1911
    %v1913 = vand.u32 %v1485, 4294901760
    %v1914 = vsub.f32 %v1485, %v1913
    %v1915 = vand.u32 %v1914, 4294901760
    %v1916 = vsub.f32 %v1914, %v1915
    %v1917 = vand.u32 %v1916, 4294901760
    %1918 = vmatprep.subr.mxu0 %v1917
    %v1919 = vand.u32 %v1484, 4294901760
    %v1920 = vsub.f32 %v1484, %v1919
    %v1921 = vand.u32 %v1920, 4294901760
    %v1922 = vsub.f32 %v1920, %v1921
    %v1923 = vand.u32 %v1922, 4294901760
    %1924 = vmatpush1.msra.mxu0 %v1923
    %v1925 = vand.u32 %v1487, 4294901760
    %v1926 = vsub.f32 %v1487, %v1925
    %v1927 = vand.u32 %v1926, 4294901760
    %v1928 = vsub.f32 %v1926, %v1927
    %v1929 = vand.u32 %v1928, 4294901760
    %1930 = vmatprep.subr.mxu0 %v1929
    %v1931 = vand.u32 %v1486, 4294901760
    %v1932 = vsub.f32 %v1486, %v1931
    %v1933 = vand.u32 %v1932, 4294901760
    %v1934 = vsub.f32 %v1932, %v1933
    %v1935 = vand.u32 %v1934, 4294901760
    %1936 = vmatpush1.msra.mxu0 %v1935
    %v1937 = vand.u32 %v1489, 4294901760
    %v1938 = vsub.f32 %v1489, %v1937
    %v1939 = vand.u32 %v1938, 4294901760
    %v1940 = vsub.f32 %v1938, %v1939
    %v1941 = vand.u32 %v1940, 4294901760
    %1942 = vmatprep.subr.mxu0 %v1941
    %v1943 = vand.u32 %v1488, 4294901760
    %v1944 = vsub.f32 %v1488, %v1943
    %v1945 = vand.u32 %v1944, 4294901760
    %v1946 = vsub.f32 %v1944, %v1945
    %v1947 = vand.u32 %v1946, 4294901760
    %1948 = vmatpush1.msra.mxu0 %v1947
    %v1949 = vand.u32 %v1491, 4294901760
    %v1950 = vsub.f32 %v1491, %v1949
    %v1951 = vand.u32 %v1950, 4294901760
    %v1952 = vsub.f32 %v1950, %v1951
    %v1953 = vand.u32 %v1952, 4294901760
    %1954 = vmatprep.subr.mxu0 %v1953
    %v1955 = vand.u32 %v1490, 4294901760
    %v1956 = vsub.f32 %v1490, %v1955
    %v1957 = vand.u32 %v1956, 4294901760
    %v1958 = vsub.f32 %v1956, %v1957
    %v1959 = vand.u32 %v1958, 4294901760
    %1960 = vmatpush1.msra.mxu0 %v1959
    %v1961 = vand.u32 %v1493, 4294901760
    %v1962 = vsub.f32 %v1493, %v1961
    %v1963 = vand.u32 %v1962, 4294901760
    %v1964 = vsub.f32 %v1962, %v1963
    %v1965 = vand.u32 %v1964, 4294901760
    %1966 = vmatprep.subr.mxu0 %v1965
    %v1967 = vand.u32 %v1492, 4294901760
    %v1968 = vsub.f32 %v1492, %v1967
    %v1969 = vand.u32 %v1968, 4294901760
    %v1970 = vsub.f32 %v1968, %v1969
    %v1971 = vand.u32 %v1970, 4294901760
    %1972 = vmatpush1.msra.mxu0 %v1971
    %v1973 = vand.u32 %v1495, 4294901760
    %v1974 = vsub.f32 %v1495, %v1973
    %v1975 = vand.u32 %v1974, 4294901760
    %v1976 = vsub.f32 %v1974, %v1975
    %v1977 = vand.u32 %v1976, 4294901760
    %1978 = vmatprep.subr.mxu0 %v1977
    %v1979 = vand.u32 %v1494, 4294901760
    %v1980 = vsub.f32 %v1494, %v1979
    %v1981 = vand.u32 %v1980, 4294901760
    %v1982 = vsub.f32 %v1980, %v1981
    %v1983 = vand.u32 %v1982, 4294901760
    %1984 = vmatpush1.msra.mxu0 %v1983
    %v1985 = vand.u32 %v1497, 4294901760
    %v1986 = vsub.f32 %v1497, %v1985
    %v1987 = vand.u32 %v1986, 4294901760
    %v1988 = vsub.f32 %v1986, %v1987
    %v1989 = vand.u32 %v1988, 4294901760
    %1990 = vmatprep.subr.mxu0 %v1989
    %v1991 = vand.u32 %v1496, 4294901760
    %v1992 = vsub.f32 %v1496, %v1991
    %v1993 = vand.u32 %v1992, 4294901760
    %v1994 = vsub.f32 %v1992, %v1993
    %v1995 = vand.u32 %v1994, 4294901760
    %1996 = vmatpush1.msra.mxu0 %v1995
    %v1997 = vand.u32 %v1499, 4294901760
    %v1998 = vsub.f32 %v1499, %v1997
    %v1999 = vand.u32 %v1998, 4294901760
    %v2000 = vsub.f32 %v1998, %v1999
    %v2001 = vand.u32 %v2000, 4294901760
    %2002 = vmatprep.subr.mxu0 %v2001
    %v2003 = vand.u32 %v1498, 4294901760
    %v2004 = vsub.f32 %v1498, %v2003
    %v2005 = vand.u32 %v2004, 4294901760
    %v2006 = vsub.f32 %v2004, %v2005
    %v2007 = vand.u32 %v2006, 4294901760
    %2008 = vmatpush1.msra.mxu0 %v2007
    %v2009 = vand.u32 %v1501, 4294901760
    %v2010 = vsub.f32 %v1501, %v2009
    %v2011 = vand.u32 %v2010, 4294901760
    %v2012 = vsub.f32 %v2010, %v2011
    %v2013 = vand.u32 %v2012, 4294901760
    %2014 = vmatprep.subr.mxu0 %v2013
    %v2015 = vand.u32 %v1500, 4294901760
    %v2016 = vsub.f32 %v1500, %v2015
    %v2017 = vand.u32 %v2016, 4294901760
    %v2018 = vsub.f32 %v2016, %v2017
    %v2019 = vand.u32 %v2018, 4294901760
    %2020 = vmatpush1.msra.mxu0 %v2019
    %v2021 = vand.u32 %v1503, 4294901760
    %v2022 = vsub.f32 %v1503, %v2021
    %v2023 = vand.u32 %v2022, 4294901760
    %v2024 = vsub.f32 %v2022, %v2023
    %v2025 = vand.u32 %v2024, 4294901760
    %2026 = vmatprep.subr.mxu0 %v2025
    %v2027 = vand.u32 %v1502, 4294901760
    %v2028 = vsub.f32 %v1502, %v2027
    %v2029 = vand.u32 %v2028, 4294901760
    %v2030 = vsub.f32 %v2028, %v2029
    %v2031 = vand.u32 %v2030, 4294901760
    %2032 = vmatpush1.msra.mxu0 %v2031
    %v2033 = vand.u32 %v1439, 4294901760
    %2034 = vmatprep.mubr.f32.mxu0 %v2033
    %v2035 = vand.u32 %v1438, 4294901760
    %2036 = vmatmul.mubr.f32.gmra.mrb[0].mxu0 %v2035
    %v2037 = vpop.f32.mrb[0].mxu0
    %v2038 = vadd.f32 %v1645, %v2037
    %v2039 = vpop.f32.mrb[0].mxu0
    %v2040 = vadd.f32 %v1647, %v2039
    %2041 = vdwg.mxu0
    %v2042 = vand.u32 %v1441, 4294901760
    %v2043 = vsub.f32 %v1441, %v2042
    %2044 = vmatprep.subr.mxu0 %v2043
    %v2045 = vand.u32 %v1440, 4294901760
    %v2046 = vsub.f32 %v1440, %v2045
    %2047 = vmatpush1.msra.mxu0 %v2046
    %v2048 = vand.u32 %v1443, 4294901760
    %v2049 = vsub.f32 %v1443, %v2048
    %2050 = vmatprep.subr.mxu0 %v2049
    %v2051 = vand.u32 %v1442, 4294901760
    %v2052 = vsub.f32 %v1442, %v2051
    %2053 = vmatpush1.msra.mxu0 %v2052
    %v2054 = vand.u32 %v1445, 4294901760
    %v2055 = vsub.f32 %v1445, %v2054
    %2056 = vmatprep.subr.mxu0 %v2055
    %v2057 = vand.u32 %v1444, 4294901760
    %v2058 = vsub.f32 %v1444, %v2057
    %2059 = vmatpush1.msra.mxu0 %v2058
    %v2060 = vand.u32 %v1447, 4294901760
    %v2061 = vsub.f32 %v1447, %v2060
    %2062 = vmatprep.subr.mxu0 %v2061
    %v2063 = vand.u32 %v1446, 4294901760
    %v2064 = vsub.f32 %v1446, %v2063
    %2065 = vmatpush1.msra.mxu0 %v2064
    %v2066 = vand.u32 %v1449, 4294901760
    %v2067 = vsub.f32 %v1449, %v2066
    %2068 = vmatprep.subr.mxu0 %v2067
    %v2069 = vand.u32 %v1448, 4294901760
    %v2070 = vsub.f32 %v1448, %v2069
    %2071 = vmatpush1.msra.mxu0 %v2070
    %v2072 = vand.u32 %v1451, 4294901760
    %v2073 = vsub.f32 %v1451, %v2072
    %2074 = vmatprep.subr.mxu0 %v2073
    %v2075 = vand.u32 %v1450, 4294901760
    %v2076 = vsub.f32 %v1450, %v2075
    %2077 = vmatpush1.msra.mxu0 %v2076
    %v2078 = vand.u32 %v1453, 4294901760
    %v2079 = vsub.f32 %v1453, %v2078
    %2080 = vmatprep.subr.mxu0 %v2079
    %v2081 = vand.u32 %v1452, 4294901760
    %v2082 = vsub.f32 %v1452, %v2081
    %2083 = vmatpush1.msra.mxu0 %v2082
    %v2084 = vand.u32 %v1455, 4294901760
    %v2085 = vsub.f32 %v1455, %v2084
    %2086 = vmatprep.subr.mxu0 %v2085
    %v2087 = vand.u32 %v1454, 4294901760
    %v2088 = vsub.f32 %v1454, %v2087
    %2089 = vmatpush1.msra.mxu0 %v2088
    %v2090 = vand.u32 %v1457, 4294901760
    %v2091 = vsub.f32 %v1457, %v2090
    %2092 = vmatprep.subr.mxu0 %v2091
    %v2093 = vand.u32 %v1456, 4294901760
    %v2094 = vsub.f32 %v1456, %v2093
    %2095 = vmatpush1.msra.mxu0 %v2094
    %v2096 = vand.u32 %v1459, 4294901760
    %v2097 = vsub.f32 %v1459, %v2096
    %2098 = vmatprep.subr.mxu0 %v2097
    %v2099 = vand.u32 %v1458, 4294901760
    %v2100 = vsub.f32 %v1458, %v2099
    %2101 = vmatpush1.msra.mxu0 %v2100
    %v2102 = vand.u32 %v1461, 4294901760
    %v2103 = vsub.f32 %v1461, %v2102
    %2104 = vmatprep.subr.mxu0 %v2103
    %v2105 = vand.u32 %v1460, 4294901760
    %v2106 = vsub.f32 %v1460, %v2105
    %2107 = vmatpush1.msra.mxu0 %v2106
    %v2108 = vand.u32 %v1463, 4294901760
    %v2109 = vsub.f32 %v1463, %v2108
    %2110 = vmatprep.subr.mxu0 %v2109
    %v2111 = vand.u32 %v1462, 4294901760
    %v2112 = vsub.f32 %v1462, %v2111
    %2113 = vmatpush1.msra.mxu0 %v2112
    %v2114 = vand.u32 %v1465, 4294901760
    %v2115 = vsub.f32 %v1465, %v2114
    %2116 = vmatprep.subr.mxu0 %v2115
    %v2117 = vand.u32 %v1464, 4294901760
    %v2118 = vsub.f32 %v1464, %v2117
    %2119 = vmatpush1.msra.mxu0 %v2118
    %v2120 = vand.u32 %v1467, 4294901760
    %v2121 = vsub.f32 %v1467, %v2120
    %2122 = vmatprep.subr.mxu0 %v2121
    %v2123 = vand.u32 %v1466, 4294901760
    %v2124 = vsub.f32 %v1466, %v2123
    %2125 = vmatpush1.msra.mxu0 %v2124
    %v2126 = vand.u32 %v1469, 4294901760
    %v2127 = vsub.f32 %v1469, %v2126
    %2128 = vmatprep.subr.mxu0 %v2127
    %v2129 = vand.u32 %v1468, 4294901760
    %v2130 = vsub.f32 %v1468, %v2129
    %2131 = vmatpush1.msra.mxu0 %v2130
    %v2132 = vand.u32 %v1471, 4294901760
    %v2133 = vsub.f32 %v1471, %v2132
    %2134 = vmatprep.subr.mxu0 %v2133
    %v2135 = vand.u32 %v1470, 4294901760
    %v2136 = vsub.f32 %v1470, %v2135
    %2137 = vmatpush1.msra.mxu0 %v2136
    %v2138 = vand.u32 %v1473, 4294901760
    %v2139 = vsub.f32 %v1473, %v2138
    %2140 = vmatprep.subr.mxu0 %v2139
    %v2141 = vand.u32 %v1472, 4294901760
    %v2142 = vsub.f32 %v1472, %v2141
    %2143 = vmatpush1.msra.mxu0 %v2142
    %v2144 = vand.u32 %v1475, 4294901760
    %v2145 = vsub.f32 %v1475, %v2144
    %2146 = vmatprep.subr.mxu0 %v2145
    %v2147 = vand.u32 %v1474, 4294901760
    %v2148 = vsub.f32 %v1474, %v2147
    %2149 = vmatpush1.msra.mxu0 %v2148
    %v2150 = vand.u32 %v1477, 4294901760
    %v2151 = vsub.f32 %v1477, %v2150
    %2152 = vmatprep.subr.mxu0 %v2151
    %v2153 = vand.u32 %v1476, 4294901760
    %v2154 = vsub.f32 %v1476, %v2153
    %2155 = vmatpush1.msra.mxu0 %v2154
    %v2156 = vand.u32 %v1479, 4294901760
    %v2157 = vsub.f32 %v1479, %v2156
    %2158 = vmatprep.subr.mxu0 %v2157
    %v2159 = vand.u32 %v1478, 4294901760
    %v2160 = vsub.f32 %v1478, %v2159
    %2161 = vmatpush1.msra.mxu0 %v2160
    %v2162 = vand.u32 %v1481, 4294901760
    %v2163 = vsub.f32 %v1481, %v2162
    %2164 = vmatprep.subr.mxu0 %v2163
    %v2165 = vand.u32 %v1480, 4294901760
    %v2166 = vsub.f32 %v1480, %v2165
    %2167 = vmatpush1.msra.mxu0 %v2166
    %v2168 = vand.u32 %v1483, 4294901760
    %v2169 = vsub.f32 %v1483, %v2168
    %2170 = vmatprep.subr.mxu0 %v2169
    %v2171 = vand.u32 %v1482, 4294901760
    %v2172 = vsub.f32 %v1482, %v2171
    %2173 = vmatpush1.msra.mxu0 %v2172
    %v2174 = vand.u32 %v1485, 4294901760
    %v2175 = vsub.f32 %v1485, %v2174
    %2176 = vmatprep.subr.mxu0 %v2175
    %v2177 = vand.u32 %v1484, 4294901760
    %v2178 = vsub.f32 %v1484, %v2177
    %2179 = vmatpush1.msra.mxu0 %v2178
    %v2180 = vand.u32 %v1487, 4294901760
    %v2181 = vsub.f32 %v1487, %v2180
    %2182 = vmatprep.subr.mxu0 %v2181
    %v2183 = vand.u32 %v1486, 4294901760
    %v2184 = vsub.f32 %v1486, %v2183
    %2185 = vmatpush1.msra.mxu0 %v2184
    %v2186 = vand.u32 %v1489, 4294901760
    %v2187 = vsub.f32 %v1489, %v2186
    %2188 = vmatprep.subr.mxu0 %v2187
    %v2189 = vand.u32 %v1488, 4294901760
    %v2190 = vsub.f32 %v1488, %v2189
    %2191 = vmatpush1.msra.mxu0 %v2190
    %v2192 = vand.u32 %v1491, 4294901760
    %v2193 = vsub.f32 %v1491, %v2192
    %2194 = vmatprep.subr.mxu0 %v2193
    %v2195 = vand.u32 %v1490, 4294901760
    %v2196 = vsub.f32 %v1490, %v2195
    %2197 = vmatpush1.msra.mxu0 %v2196
    %v2198 = vand.u32 %v1493, 4294901760
    %v2199 = vsub.f32 %v1493, %v2198
    %2200 = vmatprep.subr.mxu0 %v2199
    %v2201 = vand.u32 %v1492, 4294901760
    %v2202 = vsub.f32 %v1492, %v2201
    %2203 = vmatpush1.msra.mxu0 %v2202
    %v2204 = vand.u32 %v1495, 4294901760
    %v2205 = vsub.f32 %v1495, %v2204
    %2206 = vmatprep.subr.mxu0 %v2205
    %v2207 = vand.u32 %v1494, 4294901760
    %v2208 = vsub.f32 %v1494, %v2207
    %2209 = vmatpush1.msra.mxu0 %v2208
    %v2210 = vand.u32 %v1497, 4294901760
    %v2211 = vsub.f32 %v1497, %v2210
    %2212 = vmatprep.subr.mxu0 %v2211
    %v2213 = vand.u32 %v1496, 4294901760
    %v2214 = vsub.f32 %v1496, %v2213
    %2215 = vmatpush1.msra.mxu0 %v2214
    %v2216 = vand.u32 %v1499, 4294901760
    %v2217 = vsub.f32 %v1499, %v2216
    %2218 = vmatprep.subr.mxu0 %v2217
    %v2219 = vand.u32 %v1498, 4294901760
    %v2220 = vsub.f32 %v1498, %v2219
    %2221 = vmatpush1.msra.mxu0 %v2220
    %v2222 = vand.u32 %v1501, 4294901760
    %v2223 = vsub.f32 %v1501, %v2222
    %2224 = vmatprep.subr.mxu0 %v2223
    %v2225 = vand.u32 %v1500, 4294901760
    %v2226 = vsub.f32 %v1500, %v2225
    %2227 = vmatpush1.msra.mxu0 %v2226
    %v2228 = vand.u32 %v1503, 4294901760
    %v2229 = vsub.f32 %v1503, %v2228
    %2230 = vmatprep.subr.mxu0 %v2229
    %v2231 = vand.u32 %v1502, 4294901760
    %v2232 = vsub.f32 %v1502, %v2231
    %2233 = vmatpush1.msra.mxu0 %v2232
    %v2234 = vand.u32 %v1439, 4294901760
    %v2235 = vsub.f32 %v1439, %v2234
    %2236 = vmatprep.mubr.f32.mxu0 %v2235
    %v2237 = vand.u32 %v1438, 4294901760
    %v2238 = vsub.f32 %v1438, %v2237
    %2239 = vmatmul.mubr.f32.gmra.mrb[0].mxu0 %v2238
    %v2240 = vpop.f32.mrb[0].mxu0
    %v2241 = vadd.f32 %v2038, %v2240
    %v2242 = vpop.f32.mrb[0].mxu0
    %v2243 = vadd.f32 %v2040, %v2242
    %2244 = vdwg.mxu0
    %v2245 = vand.u32 %v1441, 4294901760
    %2246 = vmatprep.subr.mxu0 %v2245
    %v2247 = vand.u32 %v1440, 4294901760
    %2248 = vmatpush1.msra.mxu0 %v2247
    %v2249 = vand.u32 %v1443, 4294901760
    %2250 = vmatprep.subr.mxu0 %v2249
    %v2251 = vand.u32 %v1442, 4294901760
    %2252 = vmatpush1.msra.mxu0 %v2251
    %v2253 = vand.u32 %v1445, 4294901760
    %2254 = vmatprep.subr.mxu0 %v2253
    %v2255 = vand.u32 %v1444, 4294901760
    %2256 = vmatpush1.msra.mxu0 %v2255
    %v2257 = vand.u32 %v1447, 4294901760
    %2258 = vmatprep.subr.mxu0 %v2257
    %v2259 = vand.u32 %v1446, 4294901760
    %2260 = vmatpush1.msra.mxu0 %v2259
    %v2261 = vand.u32 %v1449, 4294901760
    %2262 = vmatprep.subr.mxu0 %v2261
    %v2263 = vand.u32 %v1448, 4294901760
    %2264 = vmatpush1.msra.mxu0 %v2263
    %v2265 = vand.u32 %v1451, 4294901760
    %2266 = vmatprep.subr.mxu0 %v2265
    %v2267 = vand.u32 %v1450, 4294901760
    %2268 = vmatpush1.msra.mxu0 %v2267
    %v2269 = vand.u32 %v1453, 4294901760
    %2270 = vmatprep.subr.mxu0 %v2269
    %v2271 = vand.u32 %v1452, 4294901760
    %2272 = vmatpush1.msra.mxu0 %v2271
    %v2273 = vand.u32 %v1455, 4294901760
    %2274 = vmatprep.subr.mxu0 %v2273
    %v2275 = vand.u32 %v1454, 4294901760
    %2276 = vmatpush1.msra.mxu0 %v2275
    %v2277 = vand.u32 %v1457, 4294901760
    %2278 = vmatprep.subr.mxu0 %v2277
    %v2279 = vand.u32 %v1456, 4294901760
    %2280 = vmatpush1.msra.mxu0 %v2279
    %v2281 = vand.u32 %v1459, 4294901760
    %2282 = vmatprep.subr.mxu0 %v2281
    %v2283 = vand.u32 %v1458, 4294901760
    %2284 = vmatpush1.msra.mxu0 %v2283
    %v2285 = vand.u32 %v1461, 4294901760
    %2286 = vmatprep.subr.mxu0 %v2285
    %v2287 = vand.u32 %v1460, 4294901760
    %2288 = vmatpush1.msra.mxu0 %v2287
    %v2289 = vand.u32 %v1463, 4294901760
    %2290 = vmatprep.subr.mxu0 %v2289
    %v2291 = vand.u32 %v1462, 4294901760
    %2292 = vmatpush1.msra.mxu0 %v2291
    %v2293 = vand.u32 %v1465, 4294901760
    %2294 = vmatprep.subr.mxu0 %v2293
    %v2295 = vand.u32 %v1464, 4294901760
    %2296 = vmatpush1.msra.mxu0 %v2295
    %v2297 = vand.u32 %v1467, 4294901760
    %2298 = vmatprep.subr.mxu0 %v2297
    %v2299 = vand.u32 %v1466, 4294901760
    %2300 = vmatpush1.msra.mxu0 %v2299
    %v2301 = vand.u32 %v1469, 4294901760
    %2302 = vmatprep.subr.mxu0 %v2301
    %v2303 = vand.u32 %v1468, 4294901760
    %2304 = vmatpush1.msra.mxu0 %v2303
    %v2305 = vand.u32 %v1471, 4294901760
    %2306 = vmatprep.subr.mxu0 %v2305
    %v2307 = vand.u32 %v1470, 4294901760
    %2308 = vmatpush1.msra.mxu0 %v2307
    %v2309 = vand.u32 %v1473, 4294901760
    %2310 = vmatprep.subr.mxu0 %v2309
    %v2311 = vand.u32 %v1472, 4294901760
    %2312 = vmatpush1.msra.mxu0 %v2311
    %v2313 = vand.u32 %v1475, 4294901760
    %2314 = vmatprep.subr.mxu0 %v2313
    %v2315 = vand.u32 %v1474, 4294901760
    %2316 = vmatpush1.msra.mxu0 %v2315
    %v2317 = vand.u32 %v1477, 4294901760
    %2318 = vmatprep.subr.mxu0 %v2317
    %v2319 = vand.u32 %v1476, 4294901760
    %2320 = vmatpush1.msra.mxu0 %v2319
    %v2321 = vand.u32 %v1479, 4294901760
    %2322 = vmatprep.subr.mxu0 %v2321
    %v2323 = vand.u32 %v1478, 4294901760
    %2324 = vmatpush1.msra.mxu0 %v2323
    %v2325 = vand.u32 %v1481, 4294901760
    %2326 = vmatprep.subr.mxu0 %v2325
    %v2327 = vand.u32 %v1480, 4294901760
    %2328 = vmatpush1.msra.mxu0 %v2327
    %v2329 = vand.u32 %v1483, 4294901760
    %2330 = vmatprep.subr.mxu0 %v2329
    %v2331 = vand.u32 %v1482, 4294901760
    %2332 = vmatpush1.msra.mxu0 %v2331
    %v2333 = vand.u32 %v1485, 4294901760
    %2334 = vmatprep.subr.mxu0 %v2333
    %v2335 = vand.u32 %v1484, 4294901760
    %2336 = vmatpush1.msra.mxu0 %v2335
    %v2337 = vand.u32 %v1487, 4294901760
    %2338 = vmatprep.subr.mxu0 %v2337
    %v2339 = vand.u32 %v1486, 4294901760
    %2340 = vmatpush1.msra.mxu0 %v2339
    %v2341 = vand.u32 %v1489, 4294901760
    %2342 = vmatprep.subr.mxu0 %v2341
    %v2343 = vand.u32 %v1488, 4294901760
    %2344 = vmatpush1.msra.mxu0 %v2343
    %v2345 = vand.u32 %v1491, 4294901760
    %2346 = vmatprep.subr.mxu0 %v2345
    %v2347 = vand.u32 %v1490, 4294901760
    %2348 = vmatpush1.msra.mxu0 %v2347
    %v2349 = vand.u32 %v1493, 4294901760
    %2350 = vmatprep.subr.mxu0 %v2349
    %v2351 = vand.u32 %v1492, 4294901760
    %2352 = vmatpush1.msra.mxu0 %v2351
    %v2353 = vand.u32 %v1495, 4294901760
    %2354 = vmatprep.subr.mxu0 %v2353
    %v2355 = vand.u32 %v1494, 4294901760
    %2356 = vmatpush1.msra.mxu0 %v2355
    %v2357 = vand.u32 %v1497, 4294901760
    %2358 = vmatprep.subr.mxu0 %v2357
    %v2359 = vand.u32 %v1496, 4294901760
    %2360 = vmatpush1.msra.mxu0 %v2359
    %v2361 = vand.u32 %v1499, 4294901760
    %2362 = vmatprep.subr.mxu0 %v2361
    %v2363 = vand.u32 %v1498, 4294901760
    %2364 = vmatpush1.msra.mxu0 %v2363
    %v2365 = vand.u32 %v1501, 4294901760
    %2366 = vmatprep.subr.mxu0 %v2365
    %v2367 = vand.u32 %v1500, 4294901760
    %2368 = vmatpush1.msra.mxu0 %v2367
    %v2369 = vand.u32 %v1503, 4294901760
    %2370 = vmatprep.subr.mxu0 %v2369
    %v2371 = vand.u32 %v1502, 4294901760
    %2372 = vmatpush1.msra.mxu0 %v2371
    %v2373 = vand.u32 %v1439, 4294901760
    %v2374 = vsub.f32 %v1439, %v2373
    %v2375 = vand.u32 %v2374, 4294901760
    %2376 = vmatprep.mubr.f32.mxu0 %v2375
    %v2377 = vand.u32 %v1438, 4294901760
    %v2378 = vsub.f32 %v1438, %v2377
    %v2379 = vand.u32 %v2378, 4294901760
    %2380 = vmatmul.mubr.f32.gmra.mrb[0].mxu0 %v2379
    %v2381 = vpop.f32.mrb[0].mxu0
    %v2382 = vadd.f32 %v2241, %v2381
    %v2383 = vpop.f32.mrb[0].mxu0
    %v2384 = vadd.f32 %v2243, %v2383
    %2385 = vdwg.mxu0
    %v2386 = vand.u32 %v1441, 4294901760
    %v2387 = vsub.f32 %v1441, %v2386
    %v2388 = vand.u32 %v2387, 4294901760
    %2389 = vmatprep.subr.mxu0 %v2388
    %v2390 = vand.u32 %v1440, 4294901760
    %v2391 = vsub.f32 %v1440, %v2390
    %v2392 = vand.u32 %v2391, 4294901760
    %2393 = vmatpush1.msra.mxu0 %v2392
    %v2394 = vand.u32 %v1443, 4294901760
    %v2395 = vsub.f32 %v1443, %v2394
    %v2396 = vand.u32 %v2395, 4294901760
    %2397 = vmatprep.subr.mxu0 %v2396
    %v2398 = vand.u32 %v1442, 4294901760
    %v2399 = vsub.f32 %v1442, %v2398
    %v2400 = vand.u32 %v2399, 4294901760
    %2401 = vmatpush1.msra.mxu0 %v2400
    %v2402 = vand.u32 %v1445, 4294901760
    %v2403 = vsub.f32 %v1445, %v2402
    %v2404 = vand.u32 %v2403, 4294901760
    %2405 = vmatprep.subr.mxu0 %v2404
    %v2406 = vand.u32 %v1444, 4294901760
    %v2407 = vsub.f32 %v1444, %v2406
    %v2408 = vand.u32 %v2407, 4294901760
    %2409 = vmatpush1.msra.mxu0 %v2408
    %v2410 = vand.u32 %v1447, 4294901760
    %v2411 = vsub.f32 %v1447, %v2410
    %v2412 = vand.u32 %v2411, 4294901760
    %2413 = vmatprep.subr.mxu0 %v2412
    %v2414 = vand.u32 %v1446, 4294901760
    %v2415 = vsub.f32 %v1446, %v2414
    %v2416 = vand.u32 %v2415, 4294901760
    %2417 = vmatpush1.msra.mxu0 %v2416
    %v2418 = vand.u32 %v1449, 4294901760
    %v2419 = vsub.f32 %v1449, %v2418
    %v2420 = vand.u32 %v2419, 4294901760
    %2421 = vmatprep.subr.mxu0 %v2420
    %v2422 = vand.u32 %v1448, 4294901760
    %v2423 = vsub.f32 %v1448, %v2422
    %v2424 = vand.u32 %v2423, 4294901760
    %2425 = vmatpush1.msra.mxu0 %v2424
    %v2426 = vand.u32 %v1451, 4294901760
    %v2427 = vsub.f32 %v1451, %v2426
    %v2428 = vand.u32 %v2427, 4294901760
    %2429 = vmatprep.subr.mxu0 %v2428
    %v2430 = vand.u32 %v1450, 4294901760
    %v2431 = vsub.f32 %v1450, %v2430
    %v2432 = vand.u32 %v2431, 4294901760
    %2433 = vmatpush1.msra.mxu0 %v2432
    %v2434 = vand.u32 %v1453, 4294901760
    %v2435 = vsub.f32 %v1453, %v2434
    %v2436 = vand.u32 %v2435, 4294901760
    %2437 = vmatprep.subr.mxu0 %v2436
    %v2438 = vand.u32 %v1452, 4294901760
    %v2439 = vsub.f32 %v1452, %v2438
    %v2440 = vand.u32 %v2439, 4294901760
    %2441 = vmatpush1.msra.mxu0 %v2440
    %v2442 = vand.u32 %v1455, 4294901760
    %v2443 = vsub.f32 %v1455, %v2442
    %v2444 = vand.u32 %v2443, 4294901760
    %2445 = vmatprep.subr.mxu0 %v2444
    %v2446 = vand.u32 %v1454, 4294901760
    %v2447 = vsub.f32 %v1454, %v2446
    %v2448 = vand.u32 %v2447, 4294901760
    %2449 = vmatpush1.msra.mxu0 %v2448
    %v2450 = vand.u32 %v1457, 4294901760
    %v2451 = vsub.f32 %v1457, %v2450
    %v2452 = vand.u32 %v2451, 4294901760
    %2453 = vmatprep.subr.mxu0 %v2452
    %v2454 = vand.u32 %v1456, 4294901760
    %v2455 = vsub.f32 %v1456, %v2454
    %v2456 = vand.u32 %v2455, 4294901760
    %2457 = vmatpush1.msra.mxu0 %v2456
    %v2458 = vand.u32 %v1459, 4294901760
    %v2459 = vsub.f32 %v1459, %v2458
    %v2460 = vand.u32 %v2459, 4294901760
    %2461 = vmatprep.subr.mxu0 %v2460
    %v2462 = vand.u32 %v1458, 4294901760
    %v2463 = vsub.f32 %v1458, %v2462
    %v2464 = vand.u32 %v2463, 4294901760
    %2465 = vmatpush1.msra.mxu0 %v2464
    %v2466 = vand.u32 %v1461, 4294901760
    %v2467 = vsub.f32 %v1461, %v2466
    %v2468 = vand.u32 %v2467, 4294901760
    %2469 = vmatprep.subr.mxu0 %v2468
    %v2470 = vand.u32 %v1460, 4294901760
    %v2471 = vsub.f32 %v1460, %v2470
    %v2472 = vand.u32 %v2471, 4294901760
    %2473 = vmatpush1.msra.mxu0 %v2472
    %v2474 = vand.u32 %v1463, 4294901760
    %v2475 = vsub.f32 %v1463, %v2474
    %v2476 = vand.u32 %v2475, 4294901760
    %2477 = vmatprep.subr.mxu0 %v2476
    %v2478 = vand.u32 %v1462, 4294901760
    %v2479 = vsub.f32 %v1462, %v2478
    %v2480 = vand.u32 %v2479, 4294901760
    %2481 = vmatpush1.msra.mxu0 %v2480
    %v2482 = vand.u32 %v1465, 4294901760
    %v2483 = vsub.f32 %v1465, %v2482
    %v2484 = vand.u32 %v2483, 4294901760
    %2485 = vmatprep.subr.mxu0 %v2484
    %v2486 = vand.u32 %v1464, 4294901760
    %v2487 = vsub.f32 %v1464, %v2486
    %v2488 = vand.u32 %v2487, 4294901760
    %2489 = vmatpush1.msra.mxu0 %v2488
    %v2490 = vand.u32 %v1467, 4294901760
    %v2491 = vsub.f32 %v1467, %v2490
    %v2492 = vand.u32 %v2491, 4294901760
    %2493 = vmatprep.subr.mxu0 %v2492
    %v2494 = vand.u32 %v1466, 4294901760
    %v2495 = vsub.f32 %v1466, %v2494
    %v2496 = vand.u32 %v2495, 4294901760
    %2497 = vmatpush1.msra.mxu0 %v2496
    %v2498 = vand.u32 %v1469, 4294901760
    %v2499 = vsub.f32 %v1469, %v2498
    %v2500 = vand.u32 %v2499, 4294901760
    %2501 = vmatprep.subr.mxu0 %v2500
    %v2502 = vand.u32 %v1468, 4294901760
    %v2503 = vsub.f32 %v1468, %v2502
    %v2504 = vand.u32 %v2503, 4294901760
    %2505 = vmatpush1.msra.mxu0 %v2504
    %v2506 = vand.u32 %v1471, 4294901760
    %v2507 = vsub.f32 %v1471, %v2506
    %v2508 = vand.u32 %v2507, 4294901760
    %2509 = vmatprep.subr.mxu0 %v2508
    %v2510 = vand.u32 %v1470, 4294901760
    %v2511 = vsub.f32 %v1470, %v2510
    %v2512 = vand.u32 %v2511, 4294901760
    %2513 = vmatpush1.msra.mxu0 %v2512
    %v2514 = vand.u32 %v1473, 4294901760
    %v2515 = vsub.f32 %v1473, %v2514
    %v2516 = vand.u32 %v2515, 4294901760
    %2517 = vmatprep.subr.mxu0 %v2516
    %v2518 = vand.u32 %v1472, 4294901760
    %v2519 = vsub.f32 %v1472, %v2518
    %v2520 = vand.u32 %v2519, 4294901760
    %2521 = vmatpush1.msra.mxu0 %v2520
    %v2522 = vand.u32 %v1475, 4294901760
    %v2523 = vsub.f32 %v1475, %v2522
    %v2524 = vand.u32 %v2523, 4294901760
    %2525 = vmatprep.subr.mxu0 %v2524
    %v2526 = vand.u32 %v1474, 4294901760
    %v2527 = vsub.f32 %v1474, %v2526
    %v2528 = vand.u32 %v2527, 4294901760
    %2529 = vmatpush1.msra.mxu0 %v2528
    %v2530 = vand.u32 %v1477, 4294901760
    %v2531 = vsub.f32 %v1477, %v2530
    %v2532 = vand.u32 %v2531, 4294901760
    %2533 = vmatprep.subr.mxu0 %v2532
    %v2534 = vand.u32 %v1476, 4294901760
    %v2535 = vsub.f32 %v1476, %v2534
    %v2536 = vand.u32 %v2535, 4294901760
    %2537 = vmatpush1.msra.mxu0 %v2536
    %v2538 = vand.u32 %v1479, 4294901760
    %v2539 = vsub.f32 %v1479, %v2538
    %v2540 = vand.u32 %v2539, 4294901760
    %2541 = vmatprep.subr.mxu0 %v2540
    %v2542 = vand.u32 %v1478, 4294901760
    %v2543 = vsub.f32 %v1478, %v2542
    %v2544 = vand.u32 %v2543, 4294901760
    %2545 = vmatpush1.msra.mxu0 %v2544
    %v2546 = vand.u32 %v1481, 4294901760
    %v2547 = vsub.f32 %v1481, %v2546
    %v2548 = vand.u32 %v2547, 4294901760
    %2549 = vmatprep.subr.mxu0 %v2548
    %v2550 = vand.u32 %v1480, 4294901760
    %v2551 = vsub.f32 %v1480, %v2550
    %v2552 = vand.u32 %v2551, 4294901760
    %2553 = vmatpush1.msra.mxu0 %v2552
    %v2554 = vand.u32 %v1483, 4294901760
    %v2555 = vsub.f32 %v1483, %v2554
    %v2556 = vand.u32 %v2555, 4294901760
    %2557 = vmatprep.subr.mxu0 %v2556
    %v2558 = vand.u32 %v1482, 4294901760
    %v2559 = vsub.f32 %v1482, %v2558
    %v2560 = vand.u32 %v2559, 4294901760
    %2561 = vmatpush1.msra.mxu0 %v2560
    %v2562 = vand.u32 %v1485, 4294901760
    %v2563 = vsub.f32 %v1485, %v2562
    %v2564 = vand.u32 %v2563, 4294901760
    %2565 = vmatprep.subr.mxu0 %v2564
    %v2566 = vand.u32 %v1484, 4294901760
    %v2567 = vsub.f32 %v1484, %v2566
    %v2568 = vand.u32 %v2567, 4294901760
    %2569 = vmatpush1.msra.mxu0 %v2568
    %v2570 = vand.u32 %v1487, 4294901760
    %v2571 = vsub.f32 %v1487, %v2570
    %v2572 = vand.u32 %v2571, 4294901760
    %2573 = vmatprep.subr.mxu0 %v2572
    %v2574 = vand.u32 %v1486, 4294901760
    %v2575 = vsub.f32 %v1486, %v2574
    %v2576 = vand.u32 %v2575, 4294901760
    %2577 = vmatpush1.msra.mxu0 %v2576
    %v2578 = vand.u32 %v1489, 4294901760
    %v2579 = vsub.f32 %v1489, %v2578
    %v2580 = vand.u32 %v2579, 4294901760
    %2581 = vmatprep.subr.mxu0 %v2580
    %v2582 = vand.u32 %v1488, 4294901760
    %v2583 = vsub.f32 %v1488, %v2582
    %v2584 = vand.u32 %v2583, 4294901760
    %2585 = vmatpush1.msra.mxu0 %v2584
    %v2586 = vand.u32 %v1491, 4294901760
    %v2587 = vsub.f32 %v1491, %v2586
    %v2588 = vand.u32 %v2587, 4294901760
    %2589 = vmatprep.subr.mxu0 %v2588
    %v2590 = vand.u32 %v1490, 4294901760
    %v2591 = vsub.f32 %v1490, %v2590
    %v2592 = vand.u32 %v2591, 4294901760
    %2593 = vmatpush1.msra.mxu0 %v2592
    %v2594 = vand.u32 %v1493, 4294901760
    %v2595 = vsub.f32 %v1493, %v2594
    %v2596 = vand.u32 %v2595, 4294901760
    %2597 = vmatprep.subr.mxu0 %v2596
    %v2598 = vand.u32 %v1492, 4294901760
    %v2599 = vsub.f32 %v1492, %v2598
    %v2600 = vand.u32 %v2599, 4294901760
    %2601 = vmatpush1.msra.mxu0 %v2600
    %v2602 = vand.u32 %v1495, 4294901760
    %v2603 = vsub.f32 %v1495, %v2602
    %v2604 = vand.u32 %v2603, 4294901760
    %2605 = vmatprep.subr.mxu0 %v2604
    %v2606 = vand.u32 %v1494, 4294901760
    %v2607 = vsub.f32 %v1494, %v2606
    %v2608 = vand.u32 %v2607, 4294901760
    %2609 = vmatpush1.msra.mxu0 %v2608
    %v2610 = vand.u32 %v1497, 4294901760
    %v2611 = vsub.f32 %v1497, %v2610
    %v2612 = vand.u32 %v2611, 4294901760
    %2613 = vmatprep.subr.mxu0 %v2612
    %v2614 = vand.u32 %v1496, 4294901760
    %v2615 = vsub.f32 %v1496, %v2614
    %v2616 = vand.u32 %v2615, 4294901760
    %2617 = vmatpush1.msra.mxu0 %v2616
    %v2618 = vand.u32 %v1499, 4294901760
    %v2619 = vsub.f32 %v1499, %v2618
    %v2620 = vand.u32 %v2619, 4294901760
    %2621 = vmatprep.subr.mxu0 %v2620
    %v2622 = vand.u32 %v1498, 4294901760
    %v2623 = vsub.f32 %v1498, %v2622
    %v2624 = vand.u32 %v2623, 4294901760
    %2625 = vmatpush1.msra.mxu0 %v2624
    %v2626 = vand.u32 %v1501, 4294901760
    %v2627 = vsub.f32 %v1501, %v2626
    %v2628 = vand.u32 %v2627, 4294901760
    %2629 = vmatprep.subr.mxu0 %v2628
    %v2630 = vand.u32 %v1500, 4294901760
    %v2631 = vsub.f32 %v1500, %v2630
    %v2632 = vand.u32 %v2631, 4294901760
    %2633 = vmatpush1.msra.mxu0 %v2632
    %v2634 = vand.u32 %v1503, 4294901760
    %v2635 = vsub.f32 %v1503, %v2634
    %v2636 = vand.u32 %v2635, 4294901760
    %2637 = vmatprep.subr.mxu0 %v2636
    %v2638 = vand.u32 %v1502, 4294901760
    %v2639 = vsub.f32 %v1502, %v2638
    %v2640 = vand.u32 %v2639, 4294901760
    %2641 = vmatpush1.msra.mxu0 %v2640
    %v2642 = vand.u32 %v1439, 4294901760
    %2643 = vmatprep.mubr.f32.mxu0 %v2642
    %v2644 = vand.u32 %v1438, 4294901760
    %2645 = vmatmul.mubr.f32.gmra.mrb[0].mxu0 %v2644
    %v2646 = vpop.f32.mrb[0].mxu0
    %v2647 = vadd.f32 %v2382, %v2646
    %v2648 = vpop.f32.mrb[0].mxu0
    %v2649 = vadd.f32 %v2384, %v2648
    %2650 = vdwg.mxu0
    %v2651 = vand.u32 %v1441, 4294901760
    %2652 = vmatprep.subr.mxu0 %v2651
    %v2653 = vand.u32 %v1440, 4294901760
    %2654 = vmatpush1.msra.mxu0 %v2653
    %v2655 = vand.u32 %v1443, 4294901760
    %2656 = vmatprep.subr.mxu0 %v2655
    %v2657 = vand.u32 %v1442, 4294901760
    %2658 = vmatpush1.msra.mxu0 %v2657
    %v2659 = vand.u32 %v1445, 4294901760
    %2660 = vmatprep.subr.mxu0 %v2659
    %v2661 = vand.u32 %v1444, 4294901760
    %2662 = vmatpush1.msra.mxu0 %v2661
    %v2663 = vand.u32 %v1447, 4294901760
    %2664 = vmatprep.subr.mxu0 %v2663
    %v2665 = vand.u32 %v1446, 4294901760
    %2666 = vmatpush1.msra.mxu0 %v2665
    %v2667 = vand.u32 %v1449, 4294901760
    %2668 = vmatprep.subr.mxu0 %v2667
    %v2669 = vand.u32 %v1448, 4294901760
    %2670 = vmatpush1.msra.mxu0 %v2669
    %v2671 = vand.u32 %v1451, 4294901760
    %2672 = vmatprep.subr.mxu0 %v2671
    %v2673 = vand.u32 %v1450, 4294901760
    %2674 = vmatpush1.msra.mxu0 %v2673
    %v2675 = vand.u32 %v1453, 4294901760
    %2676 = vmatprep.subr.mxu0 %v2675
    %v2677 = vand.u32 %v1452, 4294901760
    %2678 = vmatpush1.msra.mxu0 %v2677
    %v2679 = vand.u32 %v1455, 4294901760
    %2680 = vmatprep.subr.mxu0 %v2679
    %v2681 = vand.u32 %v1454, 4294901760
    %2682 = vmatpush1.msra.mxu0 %v2681
    %v2683 = vand.u32 %v1457, 4294901760
    %2684 = vmatprep.subr.mxu0 %v2683
    %v2685 = vand.u32 %v1456, 4294901760
    %2686 = vmatpush1.msra.mxu0 %v2685
    %v2687 = vand.u32 %v1459, 4294901760
    %2688 = vmatprep.subr.mxu0 %v2687
    %v2689 = vand.u32 %v1458, 4294901760
    %2690 = vmatpush1.msra.mxu0 %v2689
    %v2691 = vand.u32 %v1461, 4294901760
    %2692 = vmatprep.subr.mxu0 %v2691
    %v2693 = vand.u32 %v1460, 4294901760
    %2694 = vmatpush1.msra.mxu0 %v2693
    %v2695 = vand.u32 %v1463, 4294901760
    %2696 = vmatprep.subr.mxu0 %v2695
    %v2697 = vand.u32 %v1462, 4294901760
    %2698 = vmatpush1.msra.mxu0 %v2697
    %v2699 = vand.u32 %v1465, 4294901760
    %2700 = vmatprep.subr.mxu0 %v2699
    %v2701 = vand.u32 %v1464, 4294901760
    %2702 = vmatpush1.msra.mxu0 %v2701
    %v2703 = vand.u32 %v1467, 4294901760
    %2704 = vmatprep.subr.mxu0 %v2703
    %v2705 = vand.u32 %v1466, 4294901760
    %2706 = vmatpush1.msra.mxu0 %v2705
    %v2707 = vand.u32 %v1469, 4294901760
    %2708 = vmatprep.subr.mxu0 %v2707
    %v2709 = vand.u32 %v1468, 4294901760
    %2710 = vmatpush1.msra.mxu0 %v2709
    %v2711 = vand.u32 %v1471, 4294901760
    %2712 = vmatprep.subr.mxu0 %v2711
    %v2713 = vand.u32 %v1470, 4294901760
    %2714 = vmatpush1.msra.mxu0 %v2713
    %v2715 = vand.u32 %v1473, 4294901760
    %2716 = vmatprep.subr.mxu0 %v2715
    %v2717 = vand.u32 %v1472, 4294901760
    %2718 = vmatpush1.msra.mxu0 %v2717
    %v2719 = vand.u32 %v1475, 4294901760
    %2720 = vmatprep.subr.mxu0 %v2719
    %v2721 = vand.u32 %v1474, 4294901760
    %2722 = vmatpush1.msra.mxu0 %v2721
    %v2723 = vand.u32 %v1477, 4294901760
    %2724 = vmatprep.subr.mxu0 %v2723
    %v2725 = vand.u32 %v1476, 4294901760
    %2726 = vmatpush1.msra.mxu0 %v2725
    %v2727 = vand.u32 %v1479, 4294901760
    %2728 = vmatprep.subr.mxu0 %v2727
    %v2729 = vand.u32 %v1478, 4294901760
    %2730 = vmatpush1.msra.mxu0 %v2729
    %v2731 = vand.u32 %v1481, 4294901760
    %2732 = vmatprep.subr.mxu0 %v2731
    %v2733 = vand.u32 %v1480, 4294901760
    %2734 = vmatpush1.msra.mxu0 %v2733
    %v2735 = vand.u32 %v1483, 4294901760
    %2736 = vmatprep.subr.mxu0 %v2735
    %v2737 = vand.u32 %v1482, 4294901760
    %2738 = vmatpush1.msra.mxu0 %v2737
    %v2739 = vand.u32 %v1485, 4294901760
    %2740 = vmatprep.subr.mxu0 %v2739
    %v2741 = vand.u32 %v1484, 4294901760
    %2742 = vmatpush1.msra.mxu0 %v2741
    %v2743 = vand.u32 %v1487, 4294901760
    %2744 = vmatprep.subr.mxu0 %v2743
    %v2745 = vand.u32 %v1486, 4294901760
    %2746 = vmatpush1.msra.mxu0 %v2745
    %v2747 = vand.u32 %v1489, 4294901760
    %2748 = vmatprep.subr.mxu0 %v2747
    %v2749 = vand.u32 %v1488, 4294901760
    %2750 = vmatpush1.msra.mxu0 %v2749
    %v2751 = vand.u32 %v1491, 4294901760
    %2752 = vmatprep.subr.mxu0 %v2751
    %v2753 = vand.u32 %v1490, 4294901760
    %2754 = vmatpush1.msra.mxu0 %v2753
    %v2755 = vand.u32 %v1493, 4294901760
    %2756 = vmatprep.subr.mxu0 %v2755
    %v2757 = vand.u32 %v1492, 4294901760
    %2758 = vmatpush1.msra.mxu0 %v2757
    %v2759 = vand.u32 %v1495, 4294901760
    %2760 = vmatprep.subr.mxu0 %v2759
    %v2761 = vand.u32 %v1494, 4294901760
    %2762 = vmatpush1.msra.mxu0 %v2761
    %v2763 = vand.u32 %v1497, 4294901760
    %2764 = vmatprep.subr.mxu0 %v2763
    %v2765 = vand.u32 %v1496, 4294901760
    %2766 = vmatpush1.msra.mxu0 %v2765
    %v2767 = vand.u32 %v1499, 4294901760
    %2768 = vmatprep.subr.mxu0 %v2767
    %v2769 = vand.u32 %v1498, 4294901760
    %2770 = vmatpush1.msra.mxu0 %v2769
    %v2771 = vand.u32 %v1501, 4294901760
    %2772 = vmatprep.subr.mxu0 %v2771
    %v2773 = vand.u32 %v1500, 4294901760
    %2774 = vmatpush1.msra.mxu0 %v2773
    %v2775 = vand.u32 %v1503, 4294901760
    %2776 = vmatprep.subr.mxu0 %v2775
    %v2777 = vand.u32 %v1502, 4294901760
    %2778 = vmatpush1.msra.mxu0 %v2777
    %v2779 = vand.u32 %v1439, 4294901760
    %2780 = vmatprep.mubr.f32.mxu0 %v2779
    %v2781 = vand.u32 %v1438, 4294901760
    %2782 = vmatmul.mubr.f32.gmra.mrb[0].mxu0 %v2781
    %v2783 = vpop.f32.mrb[0].mxu0
    %v2784 = vadd.f32 %v2647, %v2783
    %v2785 = vpop.f32.mrb[0].mxu0
    %v2786 = vadd.f32 %v2649, %v2785
    %2787 = vdwg.mxu0
    %v2788 = vmax.f32 %v2784, 0.0
    %v2789 = vmax.f32 %v2786, 0.0
    %v2790 = vmin.f32 %v2788, 1.0
    %v2791 = vmin.f32 %v2789, 1.0
    %v2792 = vld [vmem:[%s5] sm:$0x3]
    %v2794 = vlaneseq
    %v2795 = vshrl.u32 %v2794, 7
    %v2796 = vsub.s32 0, %v2795
    %v2797 = vrot.slane %v2792, %v2796
    %v2798 = vlaneseq
    %v2799 = vshrl.u32 %v2798, 7
    %v2800 = vsub.s32 1, %v2799
    %v2801 = vrot.slane %v2792, %v2800
    %v2804 = vmul.f32 %v2797, %v2790
    %v2805 = vmul.f32 %v2801, %v2791
    %v2806 = vsub.f32 1.0, %v2792
    %v2808 = vlaneseq
    %v2809 = vshrl.u32 %v2808, 7
    %v2810 = vsub.s32 0, %v2809
    %v2811 = vrot.slane %v2806, %v2810
    %v2812 = vlaneseq
    %v2813 = vshrl.u32 %v2812, 7
    %v2814 = vsub.s32 1, %v2813
    %v2815 = vrot.slane %v2806, %v2814
    %v2818 = vmul.f32 %v2811, %v1438
    %v2819 = vmul.f32 %v2815, %v1439
    %v2820 = vadd.f32 %v2804, %v2818
    %v2821 = vadd.f32 %v2805, %v2819
    %v2822 = vmul.f32 %v1438, 2.0
    %v2823 = vmul.f32 %v1439, 2.0
    %v2824 = vsub.f32 %v2822, %v2820
    %v2825 = vsub.f32 %v2823, %v2821
    %v2826 = vmax.f32 %v2824, 0.0
    %v2827 = vmax.f32 %v2825, 0.0
    %v2828 = vmin.f32 %v2826, 1.0
    %v2829 = vmin.f32 %v2827, 1.0
    %v2830 = vstv %s1389
    %v2831 = vmul.f32 %v2830, %v2828
    %v2832 = vmul.f32 %v2830, %v2829
    %s2833 = ssub.f32 1.0, %s1389
    %v2834 = vstv %s2833
    %v2835 = vmul.f32 %v2834, %v1438
    %v2836 = vmul.f32 %v2834, %v1439
    %v2837 = vadd.f32 %v2831, %v2835
    %v2838 = vadd.f32 %v2832, %v2836
    %v2839 = vmin.f32 %v2837, %v2838
    %2840 = vmin.xlane.f32.xlu0 %v2839
    %v2841 = vpop.xlane.xlu0 %2840
    %v2842 = vmax.f32 %v2837, %v2838
    %2843 = vmax.xlane.f32.xlu0 %v2842
    %v2844 = vpop.xlane.xlu0 %2843
    %v2845 = vsub.f32 %v2844, %v2841
    %vm2846 = vcmp.le.f32.partialorder %v2845, 0.0
    %v2847 = vsel %vm2846, 1.0, 0.0
    %v2848 = vsub.f32 %v2837, %v2841
    %v2849 = vsub.f32 %v2838, %v2841
    %v2850 = vadd.f32 %v2845, %v2847
    %v2851 = vrcp.pop %v2850
    %v2852 = vmul.f32 %v2848, %v2851
    %v2853 = vmul.f32 %v2849, %v2851
    %v2854 = vmax.f32 %v2852, 0.0
    %v2855 = vmax.f32 %v2853, 0.0
    %v2856 = vmin.f32 %v2854, 1.0
    %v2857 = vmin.f32 %v2855, 1.0
    %v2858 = vmax.f32 %v2837, 0.0
    %v2859 = vmax.f32 %v2838, 0.0
    %v2860 = vmin.f32 %v2858, 1.0
    %v2861 = vmin.f32 %v2859, 1.0
    %v2862 = vmul.f32 %v2847, %v2860
    %v2863 = vmul.f32 %v2847, %v2861
    %v2864 = vsub.f32 1.0, %v2847
    %v2865 = vmul.f32 %v2864, %v2856
    %v2866 = vmul.f32 %v2864, %v2857
    %v2867 = vadd.f32 %v2862, %v2865
    %v2868 = vadd.f32 %v2863, %v2866
    %v2869 = vstv %s1390
    %v2870 = vmul.f32 %v2869, %v2867
    %v2871 = vmul.f32 %v2869, %v2868
    %s2872 = ssub.f32 1.0, %s1390
    %v2873 = vstv %s2872
    %v2874 = vmul.f32 %v2873, %v2837
    %v2875 = vmul.f32 %v2873, %v2838
    %v2876 = vadd.f32 %v2870, %v2874
    %v2877 = vadd.f32 %v2871, %v2875
    %vm2878 = vcmp.ge.f32.partialorder %v2876, 0.8
    %vm2879 = vcmp.ge.f32.partialorder %v2877, 0.8
    %v2880 = vsub.f32 1.0, %v2876
    %v2881 = vsub.f32 1.0, %v2877
    %v2882 = vsel %vm2878, %v2880, %v2876
    %v2883 = vsel %vm2879, %v2881, %v2877
    %v2884 = vstv %s1391
    %v2885 = vmul.f32 %v2884, %v2882
    %v2886 = vmul.f32 %v2884, %v2883
    %s2887 = ssub.f32 1.0, %s1391
    %v2888 = vstv %s2887
    %v2889 = vmul.f32 %v2888, %v2876
    %v2890 = vmul.f32 %v2888, %v2877
    %v2891 = vadd.f32 %v2885, %v2889
    %v2892 = vadd.f32 %v2886, %v2890
    %2893 = vst [vmem:[%s6] sm:$0xff] %v2891
    %2894 = vst [vmem:[%s6 + $0x8] sm:$0xff] %v2892
    // Predicated region
    $region30: #{_augment_jit.3} parent=1 // pred_check
      _
    $region31: #{_augment_jit.3} parent=1 // pred_check_branch
      %2896 = sbr.rel (0) target = $region33
    $region32: #{_augment_jit.3} parent=1 // pred_region
      _
    $region33: #{_augment_jit.3} parent=1 // pred_fallthru
      _
    // Predicated region
    $region34: #{_augment_jit.3} parent=1 // pred_check
      _
    $region35: #{_augment_jit.3} parent=1 // pred_check_branch
      %2898 = sbr.rel (0) target = $region37
    $region36: #{_augment_jit.3} parent=1 // pred_region
      _
    $region37: #{_augment_jit.3} parent=1 // pred_fallthru
      _
    %2899 = vsyncpa [#allocation3], 1

</llo_original>
